<compile_context>
chip_gen: v6e
topology: v6e:2x2x1
jax: 0.10.0
libtpu: 0.0.40
codegen_flags: <defaults>
</compile_context>

<pallas_src>
import math

import jax
import jax.numpy as jnp
from jax.experimental import pallas as pl
from jax.experimental.pallas import tpu as pltpu


def _round_up(n, m):
    return ((n + m - 1) // m) * m


def critic_kernel(xT_ref, aT_ref,
                  w1_ref, b1_ref,
                  w2h_ref, w2a_ref, b2_ref,
                  w3_ref, b3_ref,
                  out_ref):
    # fc1: (H1p, S) @ (S, TB) on the MXU, bias/ReLU on the VPU.
    h1 = jnp.dot(w1_ref[...], xT_ref[...], preferred_element_type=jnp.float32)
    h1 = jnp.maximum(h1 + b1_ref[...], 0.0)

    # fc2 over concat([h1, a]) == W2h @ h1 + W2a @ a (transposed form).
    h2 = jnp.dot(w2h_ref[...], h1, preferred_element_type=jnp.float32)
    if aT_ref.shape[0] == 1:
        # K == 1 contraction: outer product on the VPU instead of an MXU pass.
        h2 = h2 + w2a_ref[...] * aT_ref[...]          # (H2p,1)*(1,TB)->(H2p,TB)
    else:
        h2 = h2 + jnp.dot(w2a_ref[...], aT_ref[...],
                          preferred_element_type=jnp.float32)
    h2 = jnp.maximum(h2 + b2_ref[...], 0.0)

    # fc3 (output width 1): VPU multiply + sublane reduce -> lane-dense (1, TB).
    q = jnp.sum(h2 * w3_ref[...], axis=0, keepdims=True) + b3_ref[...]
    out_ref[0] = q


def critic_forward(x, a, packed_params, *, block_b=256):
    """x: (B, n_states), a: (B, n_actions) -> (B, 1).

    block_b: batch tile riding the lane axis.  256 matches the 2x256 MXU on
    v6e/v7x; use 128 on v5e (4x128 MXU).
    """
    (w1t, b1c, w2h, w2a, b2c, w3c, b3s) = packed_params
    B, S = x.shape
    A = a.shape[1]
    H1p = w1t.shape[0]
    H2p = w2h.shape[0]

    TB = block_b
    G = pl.cdiv(B, TB)
    Bp = G * TB

    # Transpose + zero-pad the batch so it maps onto whole 128-lane tiles.
    xT = jnp.zeros((S, Bp), jnp.float32).at[:, :B].set(x.T.astype(jnp.float32))
    aT = jnp.zeros((A, Bp), jnp.float32).at[:, :B].set(a.T.astype(jnp.float32))

    out = pl.pallas_call(
        critic_kernel,
        out_shape=jax.ShapeDtypeStruct((G, 1, TB), jnp.float32),
        grid=(G,),
        in_specs=[
            pl.BlockSpec((S, TB), lambda i: (0, i)),     # xT   (batch-tiled)
            pl.BlockSpec((A, TB), lambda i: (0, i)),     # aT   (batch-tiled)
            pl.BlockSpec((H1p, S), lambda i: (0, 0)),    # W1   (resident)
            pl.BlockSpec((H1p, 1), lambda i: (0, 0)),    # b1
            pl.BlockSpec((H2p, H1p), lambda i: (0, 0)),  # W2h
            pl.BlockSpec((H2p, A), lambda i: (0, 0)),    # W2a
            pl.BlockSpec((H2p, 1), lambda i: (0, 0)),    # b2
            pl.BlockSpec((H2p, 1), lambda i: (0, 0)),    # w3 (as a column)
            pl.BlockSpec((1, 1), lambda i: (0, 0)),      # b3 scalar
        ],
        out_specs=pl.BlockSpec((1, 1, TB), lambda i: (i, 0, 0)),
        compiler_params=pltpu.CompilerParams(
            dimension_semantics=("parallel",)),
    )(xT, aT, w1t, b1c, w2h, w2a, b2c, w3c, b3s)

    # Lane-dense slab -> logical (B, 1).
    return out.reshape(-1)[:B][:, None]


# ---------------------------------------------------------------------------
# Parameter construction (PyTorch-equivalent init, stored in torch layout),
# plus packing/padding into the kernel-friendly layout.
# ---------------------------------------------------------------------------

def xavier_uniform(key, out_f, in_f):
    # torch.nn.init.xavier_uniform_ on an (out_features, in_features) weight.
    bound = math.sqrt(6.0 / (in_f + out_f))
    return jax.random.uniform(key, (out_f, in_f), jnp.float32, -bound, bound)


def linear_bias(key, in_f, out_f):
    # PyTorch nn.Linear default bias init: U(-1/sqrt(fan_in), 1/sqrt(fan_in)).
    bound = 1.0 / math.sqrt(in_f)
    return jax.random.uniform(key, (out_f,), jnp.float32, -bound, bound)


def init_critic_params(key, n_states, n_actions, hidden1=400, hidden2=300):
    k = jax.random.split(key, 6)
    w1 = xavier_uniform(k[0], hidden1, n_states)
    b1 = linear_bias(k[1], n_states, hidden1)
    w2 = xavier_uniform(k[2], hidden2, hidden1 + n_actions)
    b2 = linear_bias(k[3], hidden1 + n_actions, hidden2)
    w3 = xavier_uniform(k[4], 1, hidden2)
    b3 = linear_bias(k[5], hidden2, 1)
    return (w1, b1, w2, b2, w3, b3)


def pack_critic_params(params_raw, n_actions, hidden1=400, hidden2=300):
    """Pad hidden dims to multiples of 128 and split W2 into h / action parts.

    Padded weight/bias entries are zero-filled so ReLU(0)=0 keeps padded
    lanes inert and the padded w3 entries contribute nothing.
    """
    (w1, b1, w2, b2, w3, b3) = params_raw
    S = w1.shape[1]
    A = n_actions
    H1p = _round_up(hidden1, 128)   # 400 -> 512
    H2p = _round_up(hidden2, 128)   # 300 -> 384

    w1t = jnp.zeros((H1p, S), jnp.float32).at[:hidden1, :].set(w1)
    b1c = jnp.zeros((H1p, 1), jnp.float32).at[:hidden1, 0].set(b1)
    w2h = jnp.zeros((H2p, H1p), jnp.float32).at[:hidden2, :hidden1].set(
        w2[:, :hidden1])
    w2a = jnp.zeros((H2p, A), jnp.float32).at[:hidden2, :].set(w2[:, hidden1:])
    b2c = jnp.zeros((H2p, 1), jnp.float32).at[:hidden2, 0].set(b2)
    w3c = jnp.zeros((H2p, 1), jnp.float32).at[:hidden2, 0].set(w3[0])
    b3s = b3.reshape(1, 1).astype(jnp.float32)
    return (w1t, b1c, w2h, w2a, b2c, w3c, b3s)


def critic_reference(x, a, params_raw):
    (w1, b1, w2, b2, w3, b3) = params_raw
    h1 = jnp.maximum(x @ w1.T + b1, 0.0)
    h2 = jnp.maximum(jnp.concatenate([h1, a], axis=1) @ w2.T + b2, 0.0)
    return h2 @ w3.T + b3


if __name__ == "__main__":
    n_states, n_actions = 3, 1

    key = jax.random.PRNGKey(0)
    kp, kx, ka = jax.random.split(key, 3)

    raw_params = init_critic_params(kp, n_states, n_actions)
    packed_params = pack_critic_params(raw_params, n_actions)

    # Small primary case + a case that exercises multiple grid steps and
    # ragged batch padding.
    for batch, tb in ((8, 128), (200, 128)):
        x = jax.random.normal(kx, (batch, n_states), jnp.float32)
        a = jax.random.normal(ka, (batch, n_actions), jnp.float32)

        q = jax.block_until_ready(critic_forward(x, a, packed_params,
                                                 block_b=tb))
        q_ref = critic_reference(x, a, raw_params)

        assert q.shape == (batch, 1), q.shape
        assert jnp.allclose(q, q_ref, atol=1e-4, rtol=1e-4), (
            jnp.max(jnp.abs(q - q_ref)))

    print("KERNEL_OK")
</pallas_src>

<mosaic_0001>
module attributes {stable_mosaic.version = 11 : i64} {
  func.func @critic_kernel(%arg0: i32, %arg1: memref<3x128xf32, #tpu.memory_space<vmem>>, %arg2: memref<1x128xf32, #tpu.memory_space<vmem>>, %arg3: memref<512x3xf32, #tpu.memory_space<vmem>>, %arg4: memref<512x1xf32, #tpu.memory_space<vmem>>, %arg5: memref<384x512xf32, #tpu.memory_space<vmem>>, %arg6: memref<384x1xf32, #tpu.memory_space<vmem>>, %arg7: memref<384x1xf32, #tpu.memory_space<vmem>>, %arg8: memref<384x1xf32, #tpu.memory_space<vmem>>, %arg9: memref<1x1xf32, #tpu.memory_space<vmem>>, %arg10: memref<1x1x128xf32, #tpu.memory_space<vmem>>) attributes {dimension_semantics = [#tpu.dimension_semantics<parallel>], iteration_bounds = array<i64: 1>, scalar_prefetch = 0 : i64, scratch_operands = 0 : i64, tpu.core_type = #tpu.core_type<tc>, window_params = [{transform_indices = @transform_0, window_bounds = array<i64: 3, 128>}, {transform_indices = @transform_1, window_bounds = array<i64: 1, 128>}, {pipeline_mode = #tpu.pipeline_mode<synchronous>, transform_indices = @transform_2, window_bounds = array<i64: 512, 3>}, {pipeline_mode = #tpu.pipeline_mode<synchronous>, transform_indices = @transform_3, window_bounds = array<i64: 512, 1>}, {pipeline_mode = #tpu.pipeline_mode<synchronous>, transform_indices = @transform_4, window_bounds = array<i64: 384, 512>}, {pipeline_mode = #tpu.pipeline_mode<synchronous>, transform_indices = @transform_5, window_bounds = array<i64: 384, 1>}, {pipeline_mode = #tpu.pipeline_mode<synchronous>, transform_indices = @transform_6, window_bounds = array<i64: 384, 1>}, {pipeline_mode = #tpu.pipeline_mode<synchronous>, transform_indices = @transform_7, window_bounds = array<i64: 384, 1>}, {pipeline_mode = #tpu.pipeline_mode<synchronous>, transform_indices = @transform_8, window_bounds = array<i64: 1, 1>}, {transform_indices = @transform_9, window_bounds = array<i64: 1, 1, 128>}]} {
    %c0 = arith.constant 0 : index
    %c0_0 = arith.constant 0 : index
    %0 = vector.load %arg3[%c0, %c0_0] : memref<512x3xf32, #tpu.memory_space<vmem>>, vector<512x3xf32>
    %c0_1 = arith.constant 0 : index
    %c0_2 = arith.constant 0 : index
    %1 = vector.load %arg1[%c0_1, %c0_2] : memref<3x128xf32, #tpu.memory_space<vmem>>, vector<3x128xf32>
    %cst = arith.constant dense<0.000000e+00> : vector<512x128xf32>
    %2 = tpu.matmul %0, %1, %cst {dimension_numbers = #tpu.dot_dimension_numbers<[1], [0], [0], [1], [0, 0, 1, 1], [], []>} : vector<512x3xf32>, vector<3x128xf32>, vector<512x128xf32> -> vector<512x128xf32>
    %c0_3 = arith.constant 0 : index
    %c0_4 = arith.constant 0 : index
    %3 = vector.load %arg4[%c0_3, %c0_4] : memref<512x1xf32, #tpu.memory_space<vmem>>, vector<512x1xf32>
    %4 = vector.broadcast %3 : vector<512x1xf32> to vector<512x128xf32>
    %5 = arith.addf %2, %4 : vector<512x128xf32>
    %cst_5 = arith.constant 0.000000e+00 : f32
    %6 = vector.broadcast %cst_5 : f32 to vector<512x128xf32>
    %7 = arith.maximumf %5, %6 : vector<512x128xf32>
    %c0_6 = arith.constant 0 : index
    %c0_7 = arith.constant 0 : index
    %8 = vector.load %arg5[%c0_6, %c0_7] : memref<384x512xf32, #tpu.memory_space<vmem>>, vector<384x512xf32>
    %cst_8 = arith.constant dense<0.000000e+00> : vector<384x128xf32>
    %9 = tpu.matmul %8, %7, %cst_8 {dimension_numbers = #tpu.dot_dimension_numbers<[1], [0], [0], [1], [0, 0, 1, 1], [], []>} : vector<384x512xf32>, vector<512x128xf32>, vector<384x128xf32> -> vector<384x128xf32>
    %c0_9 = arith.constant 0 : index
    %c0_10 = arith.constant 0 : index
    %10 = vector.load %arg6[%c0_9, %c0_10] : memref<384x1xf32, #tpu.memory_space<vmem>>, vector<384x1xf32>
    %c0_11 = arith.constant 0 : index
    %c0_12 = arith.constant 0 : index
    %11 = vector.load %arg2[%c0_11, %c0_12] : memref<1x128xf32, #tpu.memory_space<vmem>>, vector<1x128xf32>
    %12 = vector.broadcast %10 : vector<384x1xf32> to vector<384x128xf32>
    %13 = vector.broadcast %11 : vector<1x128xf32> to vector<384x128xf32>
    %14 = arith.mulf %12, %13 : vector<384x128xf32>
    %15 = arith.addf %9, %14 : vector<384x128xf32>
    %c0_13 = arith.constant 0 : index
    %c0_14 = arith.constant 0 : index
    %16 = vector.load %arg7[%c0_13, %c0_14] : memref<384x1xf32, #tpu.memory_space<vmem>>, vector<384x1xf32>
    %17 = vector.broadcast %16 : vector<384x1xf32> to vector<384x128xf32>
    %18 = arith.addf %15, %17 : vector<384x128xf32>
    %cst_15 = arith.constant 0.000000e+00 : f32
    %19 = vector.broadcast %cst_15 : f32 to vector<384x128xf32>
    %20 = arith.maximumf %18, %19 : vector<384x128xf32>
    %c0_16 = arith.constant 0 : index
    %c0_17 = arith.constant 0 : index
    %21 = vector.load %arg8[%c0_16, %c0_17] : memref<384x1xf32, #tpu.memory_space<vmem>>, vector<384x1xf32>
    %22 = vector.broadcast %21 : vector<384x1xf32> to vector<384x128xf32>
    %23 = arith.mulf %20, %22 : vector<384x128xf32>
    %cst_18 = arith.constant dense<0.000000e+00> : vector<128xf32>
    %24 = vector.multi_reduction <add>, %23, %cst_18 [0] : vector<384x128xf32> to vector<128xf32>
    %25 = vector.shape_cast %24 : vector<128xf32> to vector<1x128xf32>
    %c0_19 = arith.constant 0 : index
    %c0_20 = arith.constant 0 : index
    %26 = vector.load %arg9[%c0_19, %c0_20] : memref<1x1xf32, #tpu.memory_space<vmem>>, vector<1x1xf32>
    %27 = vector.broadcast %26 : vector<1x1xf32> to vector<1x128xf32>
    %28 = arith.addf %25, %27 : vector<1x128xf32>
    %c0_21 = arith.constant 0 : index
    %c0_22 = arith.constant 0 : index
    %c0_23 = arith.constant 0 : index
    %29 = vector.load %arg10[%c0_21, %c0_22, %c0_23] : memref<1x1x128xf32, #tpu.memory_space<vmem>>, vector<1x1x128xf32>
    %30 = vector.shape_cast %29 : vector<1x1x128xf32> to vector<1x128xf32>
    %31 = vector.shape_cast %28 : vector<1x128xf32> to vector<1x1x128xf32>
    tpu.vector_store %arg10[%c0_21, %c0_22, %c0_23], %31 {strides = array<i32>} : memref<1x1x128xf32, #tpu.memory_space<vmem>>, vector<1x1x128xf32>,
    return
  }
  func.func @transform_0(%arg0: i32) -> (i32, i32) {
    %c0_i32 = arith.constant 0 : i32
    %c0_i32_0 = arith.constant 0 : i32
    return %c0_i32, %arg0 : i32, i32
  }
  func.func @transform_1(%arg0: i32) -> (i32, i32) {
    %c0_i32 = arith.constant 0 : i32
    %c0_i32_0 = arith.constant 0 : i32
    return %c0_i32, %arg0 : i32, i32
  }
  func.func @transform_2(%arg0: i32) -> (i32, i32) {
    %c0_i32 = arith.constant 0 : i32
    %c0_i32_0 = arith.constant 0 : i32
    %c0_i32_1 = arith.constant 0 : i32
    return %c0_i32, %c0_i32_0 : i32, i32
  }
  func.func @transform_3(%arg0: i32) -> (i32, i32) {
    %c0_i32 = arith.constant 0 : i32
    %c0_i32_0 = arith.constant 0 : i32
    %c0_i32_1 = arith.constant 0 : i32
    return %c0_i32, %c0_i32_0 : i32, i32
  }
  func.func @transform_4(%arg0: i32) -> (i32, i32) {
    %c0_i32 = arith.constant 0 : i32
    %c0_i32_0 = arith.constant 0 : i32
    %c0_i32_1 = arith.constant 0 : i32
    return %c0_i32, %c0_i32_0 : i32, i32
  }
  func.func @transform_5(%arg0: i32) -> (i32, i32) {
    %c0_i32 = arith.constant 0 : i32
    %c0_i32_0 = arith.constant 0 : i32
    %c0_i32_1 = arith.constant 0 : i32
    return %c0_i32, %c0_i32_0 : i32, i32
  }
  func.func @transform_6(%arg0: i32) -> (i32, i32) {
    %c0_i32 = arith.constant 0 : i32
    %c0_i32_0 = arith.constant 0 : i32
    %c0_i32_1 = arith.constant 0 : i32
    return %c0_i32, %c0_i32_0 : i32, i32
  }
  func.func @transform_7(%arg0: i32) -> (i32, i32) {
    %c0_i32 = arith.constant 0 : i32
    %c0_i32_0 = arith.constant 0 : i32
    %c0_i32_1 = arith.constant 0 : i32
    return %c0_i32, %c0_i32_0 : i32, i32
  }
  func.func @transform_8(%arg0: i32) -> (i32, i32) {
    %c0_i32 = arith.constant 0 : i32
    %c0_i32_0 = arith.constant 0 : i32
    %c0_i32_1 = arith.constant 0 : i32
    return %c0_i32, %c0_i32_0 : i32, i32
  }
  func.func @transform_9(%arg0: i32) -> (i32, i32, i32) {
    %c0_i32 = arith.constant 0 : i32
    %c0_i32_0 = arith.constant 0 : i32
    %c0_i32_1 = arith.constant 0 : i32
    return %arg0, %c0_i32, %c0_i32_0 : i32, i32, i32
  }
}

</mosaic_0001>

<llo_original>
// kernel: tpu_custom_call.1
$region0: #{tpu_custom_call.1}
  #allocation0 [shape = 'u32[]', space=smem, size = 0x4, offset = 0x4, fixed_abs, tag = 'smem constant byte address 0x4 - core index']
  #allocation1 [shape = 'u32[144,128]{1,0:T(1,128)}', space=vmem, size = 0x12000, scoped, tag = 'internal scratch']
  #allocation2 [shape = 'f32[1,1]{1,0:T(1,128)S(1)}', space=vmem, size = 0x200, scoped, tag = 'scoped memory for tpu_custom_call.1']
  %s0 = inlined_call_operand.vmem [shape: f32[3,128], index: 0, kind: input, shape index: {}]
  %s1 = inlined_call_operand.vmem [shape: f32[1,128], index: 1, kind: input, shape index: {}]
  %s2 = inlined_call_operand.vmem [shape: f32[512,3], index: 2, kind: input, shape index: {}]
  %s3 = inlined_call_operand.vmem [shape: f32[512,1], index: 3, kind: input, shape index: {}]
  %s4 = inlined_call_operand.vmem [shape: f32[384,512], index: 4, kind: input, shape index: {}]
  %s5 = inlined_call_operand.vmem [shape: f32[384,1], index: 5, kind: input, shape index: {}]
  %s6 = inlined_call_operand.vmem [shape: f32[384,1], index: 6, kind: input, shape index: {}]
  %s7 = inlined_call_operand.vmem [shape: f32[384,1], index: 7, kind: input, shape index: {}]
  %s8 = inlined_call_operand.<no memory space> [shape: f32[1,1], index: 8, kind: input, shape index: {}]
  %s9 = inlined_call_operand.hbm [shape: f32[1,1,128], index: 9, kind: output, shape index: {}]
  %s10 = sld [smem:[#allocation0]]
  $region46: #{tpu_custom_call.1} parent=0
    _
  %s12 = ssub.s32 1, %s10
  %s13 = scalar_select 0, %s12, %s10
  %v14 = vstv %s8
  %15 = vst [vmem:[#allocation2] sm:$0x1] %v14
  $region1: #{tpu_custom_call.1} parent=0
    #allocation3 [shape = 'u8[512]{0}', space=vmem, size = 0x400, scoped, tag = 'output window, operand 0, single buffered']
    #allocation4 [shape = 's32[1]{0}', space=sflag, size = 0x4, scoped, tag = 'scoped memory for tpu_custom_call.1']
    %16 = vsyncpa [#allocation4], 0
    // Predicated region
    $region2: #{tpu_custom_call.1} parent=1 // pred_check
      _
    $region3: #{tpu_custom_call.1} parent=1 // pred_check_branch
      %18 = sbr.rel (0) target = $region5
    $region4: #{tpu_custom_call.1} parent=1 // pred_region
      _
    $region5: #{tpu_custom_call.1} parent=1 // pred_fallthru
      _
    // Predicated region
    $region6: #{tpu_custom_call.1} parent=1 // pred_check
      _
    $region7: #{tpu_custom_call.1} parent=1 // pred_check_branch
      %20 = sbr.rel (0) target = $region9
    $region8: #{tpu_custom_call.1} parent=1 // pred_region
      _
    $region9: #{tpu_custom_call.1} parent=1 // pred_fallthru
      _
    // Predicated region
    $region10: #{tpu_custom_call.1} parent=1 // pred_check
      _
    $region11: #{tpu_custom_call.1} parent=1 // pred_check_branch
      %22 = sbr.rel (0) target = $region13
    $region12: #{tpu_custom_call.1} parent=1 // pred_region
      _
    $region13: #{tpu_custom_call.1} parent=1 // pred_fallthru
      _
    // Predicated region
    $region14: #{tpu_custom_call.1} parent=1 // pred_check
      _
    $region15: #{tpu_custom_call.1} parent=1 // pred_check_branch
      %24 = sbr.rel (0) target = $region17
    $region16: #{tpu_custom_call.1} parent=1 // pred_region
      _
    $region17: #{tpu_custom_call.1} parent=1 // pred_fallthru
      _
    // Predicated region
    $region18: #{tpu_custom_call.1} parent=1 // pred_check
      _
    $region19: #{tpu_custom_call.1} parent=1 // pred_check_branch
      %26 = sbr.rel (0) target = $region21
    $region20: #{tpu_custom_call.1} parent=1 // pred_region
      _
    $region21: #{tpu_custom_call.1} parent=1 // pred_fallthru
      _
    // Predicated region
    $region22: #{tpu_custom_call.1} parent=1 // pred_check
      _
    $region23: #{tpu_custom_call.1} parent=1 // pred_check_branch
      %28 = sbr.rel (0) target = $region25
    $region24: #{tpu_custom_call.1} parent=1 // pred_region
      _
    $region25: #{tpu_custom_call.1} parent=1 // pred_fallthru
      _
    // Predicated region
    $region26: #{tpu_custom_call.1} parent=1 // pred_check
      _
    $region27: #{tpu_custom_call.1} parent=1 // pred_check_branch
      %30 = sbr.rel (0) target = $region29
    $region28: #{tpu_custom_call.1} parent=1 // pred_region
      _
    $region29: #{tpu_custom_call.1} parent=1 // pred_fallthru
      _
    // Predicated region
    $region30: #{tpu_custom_call.1} parent=1 // pred_check
      _
    $region31: #{tpu_custom_call.1} parent=1 // pred_check_branch
      %32 = sbr.rel (0) target = $region33
    $region32: #{tpu_custom_call.1} parent=1 // pred_region
      _
    $region33: #{tpu_custom_call.1} parent=1 // pred_fallthru
      _
    // Predicated region
    $region34: #{tpu_custom_call.1} parent=1 // pred_check
      _
    $region35: #{tpu_custom_call.1} parent=1 // pred_check_branch
      %34 = sbr.rel (0) target = $region37
    $region36: #{tpu_custom_call.1} parent=1 // pred_region
      _
    $region37: #{tpu_custom_call.1} parent=1 // pred_fallthru
      _
    %v35 = vld [vmem:[%s2] sm:$0xff]
    %v36 = vld [vmem:[%s2 + $0x8] sm:$0xff]
    %v37 = vld [vmem:[%s2 + $0x10] sm:$0xff]
    %v38 = vld [vmem:[%s2 + $0x18] sm:$0xff]
    %v39 = vld [vmem:[%s2 + $0x20] sm:$0xff]
    %v40 = vld [vmem:[%s2 + $0x28] sm:$0xff]
    %v41 = vld [vmem:[%s2 + $0x30] sm:$0xff]
    %v42 = vld [vmem:[%s2 + $0x38] sm:$0xff]
    %v43 = vld [vmem:[%s2 + $0x40] sm:$0xff]
    %v44 = vld [vmem:[%s2 + $0x48] sm:$0xff]
    %v45 = vld [vmem:[%s2 + $0x50] sm:$0xff]
    %v46 = vld [vmem:[%s2 + $0x58] sm:$0xff]
    %v47 = vld [vmem:[%s2 + $0x60] sm:$0xff]
    %v48 = vld [vmem:[%s2 + $0x68] sm:$0xff]
    %v49 = vld [vmem:[%s2 + $0x70] sm:$0xff]
    %v50 = vld [vmem:[%s2 + $0x78] sm:$0xff]
    %v51 = vld [vmem:[%s2 + $0x80] sm:$0xff]
    %v52 = vld [vmem:[%s2 + $0x88] sm:$0xff]
    %v53 = vld [vmem:[%s2 + $0x90] sm:$0xff]
    %v54 = vld [vmem:[%s2 + $0x98] sm:$0xff]
    %v55 = vld [vmem:[%s2 + $0xa0] sm:$0xff]
    %v56 = vld [vmem:[%s2 + $0xa8] sm:$0xff]
    %v57 = vld [vmem:[%s2 + $0xb0] sm:$0xff]
    %v58 = vld [vmem:[%s2 + $0xb8] sm:$0xff]
    %v59 = vld [vmem:[%s2 + $0xc0] sm:$0xff]
    %v60 = vld [vmem:[%s2 + $0xc8] sm:$0xff]
    %v61 = vld [vmem:[%s2 + $0xd0] sm:$0xff]
    %v62 = vld [vmem:[%s2 + $0xd8] sm:$0xff]
    %v63 = vld [vmem:[%s2 + $0xe0] sm:$0xff]
    %v64 = vld [vmem:[%s2 + $0xe8] sm:$0xff]
    %v65 = vld [vmem:[%s2 + $0xf0] sm:$0xff]
    %v66 = vld [vmem:[%s2 + $0xf8] sm:$0xff]
    %v67 = vld [vmem:[%s2 + $0x100] sm:$0xff]
    %v68 = vld [vmem:[%s2 + $0x108] sm:$0xff]
    %v69 = vld [vmem:[%s2 + $0x110] sm:$0xff]
    %v70 = vld [vmem:[%s2 + $0x118] sm:$0xff]
    %v71 = vld [vmem:[%s2 + $0x120] sm:$0xff]
    %v72 = vld [vmem:[%s2 + $0x128] sm:$0xff]
    %v73 = vld [vmem:[%s2 + $0x130] sm:$0xff]
    %v74 = vld [vmem:[%s2 + $0x138] sm:$0xff]
    %v75 = vld [vmem:[%s2 + $0x140] sm:$0xff]
    %v76 = vld [vmem:[%s2 + $0x148] sm:$0xff]
    %v77 = vld [vmem:[%s2 + $0x150] sm:$0xff]
    %v78 = vld [vmem:[%s2 + $0x158] sm:$0xff]
    %v79 = vld [vmem:[%s2 + $0x160] sm:$0xff]
    %v80 = vld [vmem:[%s2 + $0x168] sm:$0xff]
    %v81 = vld [vmem:[%s2 + $0x170] sm:$0xff]
    %v82 = vld [vmem:[%s2 + $0x178] sm:$0xff]
    %v83 = vld [vmem:[%s2 + $0x180] sm:$0xff]
    %v84 = vld [vmem:[%s2 + $0x188] sm:$0xff]
    %v85 = vld [vmem:[%s2 + $0x190] sm:$0xff]
    %v86 = vld [vmem:[%s2 + $0x198] sm:$0xff]
    %v87 = vld [vmem:[%s2 + $0x1a0] sm:$0xff]
    %v88 = vld [vmem:[%s2 + $0x1a8] sm:$0xff]
    %v89 = vld [vmem:[%s2 + $0x1b0] sm:$0xff]
    %v90 = vld [vmem:[%s2 + $0x1b8] sm:$0xff]
    %v91 = vld [vmem:[%s2 + $0x1c0] sm:$0xff]
    %v92 = vld [vmem:[%s2 + $0x1c8] sm:$0xff]
    %v93 = vld [vmem:[%s2 + $0x1d0] sm:$0xff]
    %v94 = vld [vmem:[%s2 + $0x1d8] sm:$0xff]
    %v95 = vld [vmem:[%s2 + $0x1e0] sm:$0xff]
    %v96 = vld [vmem:[%s2 + $0x1e8] sm:$0xff]
    %v97 = vld [vmem:[%s2 + $0x1f0] sm:$0xff]
    %v98 = vld [vmem:[%s2 + $0x1f8] sm:$0xff]
    %v99 = vld [vmem:[%s0] sm:$0x7]
    %v100 = vld [vmem:[%s3] sm:$0xff]
    %v101 = vld [vmem:[%s3 + $0x8] sm:$0xff]
    %v102 = vld [vmem:[%s3 + $0x10] sm:$0xff]
    %v103 = vld [vmem:[%s3 + $0x18] sm:$0xff]
    %v104 = vld [vmem:[%s3 + $0x20] sm:$0xff]
    %v105 = vld [vmem:[%s3 + $0x28] sm:$0xff]
    %v106 = vld [vmem:[%s3 + $0x30] sm:$0xff]
    %v107 = vld [vmem:[%s3 + $0x38] sm:$0xff]
    %v108 = vld [vmem:[%s3 + $0x40] sm:$0xff]
    %v109 = vld [vmem:[%s3 + $0x48] sm:$0xff]
    %v110 = vld [vmem:[%s3 + $0x50] sm:$0xff]
    %v111 = vld [vmem:[%s3 + $0x58] sm:$0xff]
    %v112 = vld [vmem:[%s3 + $0x60] sm:$0xff]
    %v113 = vld [vmem:[%s3 + $0x68] sm:$0xff]
    %v114 = vld [vmem:[%s3 + $0x70] sm:$0xff]
    %v115 = vld [vmem:[%s3 + $0x78] sm:$0xff]
    %v116 = vld [vmem:[%s3 + $0x80] sm:$0xff]
    %v117 = vld [vmem:[%s3 + $0x88] sm:$0xff]
    %v118 = vld [vmem:[%s3 + $0x90] sm:$0xff]
    %v119 = vld [vmem:[%s3 + $0x98] sm:$0xff]
    %v120 = vld [vmem:[%s3 + $0xa0] sm:$0xff]
    %v121 = vld [vmem:[%s3 + $0xa8] sm:$0xff]
    %v122 = vld [vmem:[%s3 + $0xb0] sm:$0xff]
    %v123 = vld [vmem:[%s3 + $0xb8] sm:$0xff]
    %v124 = vld [vmem:[%s3 + $0xc0] sm:$0xff]
    %v125 = vld [vmem:[%s3 + $0xc8] sm:$0xff]
    %v126 = vld [vmem:[%s3 + $0xd0] sm:$0xff]
    %v127 = vld [vmem:[%s3 + $0xd8] sm:$0xff]
    %v128 = vld [vmem:[%s3 + $0xe0] sm:$0xff]
    %v129 = vld [vmem:[%s3 + $0xe8] sm:$0xff]
    %v130 = vld [vmem:[%s3 + $0xf0] sm:$0xff]
    %v131 = vld [vmem:[%s3 + $0xf8] sm:$0xff]
    %v132 = vld [vmem:[%s3 + $0x100] sm:$0xff]
    %v133 = vld [vmem:[%s3 + $0x108] sm:$0xff]
    %v134 = vld [vmem:[%s3 + $0x110] sm:$0xff]
    %v135 = vld [vmem:[%s3 + $0x118] sm:$0xff]
    %v136 = vld [vmem:[%s3 + $0x120] sm:$0xff]
    %v137 = vld [vmem:[%s3 + $0x128] sm:$0xff]
    %v138 = vld [vmem:[%s3 + $0x130] sm:$0xff]
    %v139 = vld [vmem:[%s3 + $0x138] sm:$0xff]
    %v140 = vld [vmem:[%s3 + $0x140] sm:$0xff]
    %v141 = vld [vmem:[%s3 + $0x148] sm:$0xff]
    %v142 = vld [vmem:[%s3 + $0x150] sm:$0xff]
    %v143 = vld [vmem:[%s3 + $0x158] sm:$0xff]
    %v144 = vld [vmem:[%s3 + $0x160] sm:$0xff]
    %v145 = vld [vmem:[%s3 + $0x168] sm:$0xff]
    %v146 = vld [vmem:[%s3 + $0x170] sm:$0xff]
    %v147 = vld [vmem:[%s3 + $0x178] sm:$0xff]
    %v148 = vld [vmem:[%s3 + $0x180] sm:$0xff]
    %v149 = vld [vmem:[%s3 + $0x188] sm:$0xff]
    %v150 = vld [vmem:[%s3 + $0x190] sm:$0xff]
    %v151 = vld [vmem:[%s3 + $0x198] sm:$0xff]
    %v152 = vld [vmem:[%s3 + $0x1a0] sm:$0xff]
    %v153 = vld [vmem:[%s3 + $0x1a8] sm:$0xff]
    %v154 = vld [vmem:[%s3 + $0x1b0] sm:$0xff]
    %v155 = vld [vmem:[%s3 + $0x1b8] sm:$0xff]
    %v156 = vld [vmem:[%s3 + $0x1c0] sm:$0xff]
    %v157 = vld [vmem:[%s3 + $0x1c8] sm:$0xff]
    %v158 = vld [vmem:[%s3 + $0x1d0] sm:$0xff]
    %v159 = vld [vmem:[%s3 + $0x1d8] sm:$0xff]
    %v160 = vld [vmem:[%s3 + $0x1e0] sm:$0xff]
    %v161 = vld [vmem:[%s3 + $0x1e8] sm:$0xff]
    %v162 = vld [vmem:[%s3 + $0x1f0] sm:$0xff]
    %v163 = vld [vmem:[%s3 + $0x1f8] sm:$0xff]
    %165 = vset.pattern.permute.xlu0 0
    %166 = vperm.xlu0 %165, %v100
    %v167 = vpop.permute.xlu0 %166
    %170 = vset.pattern.permute.xlu0 0
    %171 = vperm.xlu0 %170, %v101
    %v172 = vpop.permute.xlu0 %171
    %175 = vset.pattern.permute.xlu0 0
    %176 = vperm.xlu0 %175, %v102
    %v177 = vpop.permute.xlu0 %176
    %180 = vset.pattern.permute.xlu0 0
    %181 = vperm.xlu0 %180, %v103
    %v182 = vpop.permute.xlu0 %181
    %185 = vset.pattern.permute.xlu0 0
    %186 = vperm.xlu0 %185, %v104
    %v187 = vpop.permute.xlu0 %186
    %190 = vset.pattern.permute.xlu0 0
    %191 = vperm.xlu0 %190, %v105
    %v192 = vpop.permute.xlu0 %191
    %195 = vset.pattern.permute.xlu0 0
    %196 = vperm.xlu0 %195, %v106
    %v197 = vpop.permute.xlu0 %196
    %200 = vset.pattern.permute.xlu0 0
    %201 = vperm.xlu0 %200, %v107
    %v202 = vpop.permute.xlu0 %201
    %205 = vset.pattern.permute.xlu0 0
    %206 = vperm.xlu0 %205, %v108
    %v207 = vpop.permute.xlu0 %206
    %210 = vset.pattern.permute.xlu0 0
    %211 = vperm.xlu0 %210, %v109
    %v212 = vpop.permute.xlu0 %211
    %215 = vset.pattern.permute.xlu0 0
    %216 = vperm.xlu0 %215, %v110
    %v217 = vpop.permute.xlu0 %216
    %220 = vset.pattern.permute.xlu0 0
    %221 = vperm.xlu0 %220, %v111
    %v222 = vpop.permute.xlu0 %221
    %225 = vset.pattern.permute.xlu0 0
    %226 = vperm.xlu0 %225, %v112
    %v227 = vpop.permute.xlu0 %226
    %230 = vset.pattern.permute.xlu0 0
    %231 = vperm.xlu0 %230, %v113
    %v232 = vpop.permute.xlu0 %231
    %235 = vset.pattern.permute.xlu0 0
    %236 = vperm.xlu0 %235, %v114
    %v237 = vpop.permute.xlu0 %236
    %240 = vset.pattern.permute.xlu0 0
    %241 = vperm.xlu0 %240, %v115
    %v242 = vpop.permute.xlu0 %241
    %245 = vset.pattern.permute.xlu0 0
    %246 = vperm.xlu0 %245, %v116
    %v247 = vpop.permute.xlu0 %246
    %250 = vset.pattern.permute.xlu0 0
    %251 = vperm.xlu0 %250, %v117
    %v252 = vpop.permute.xlu0 %251
    %255 = vset.pattern.permute.xlu0 0
    %256 = vperm.xlu0 %255, %v118
    %v257 = vpop.permute.xlu0 %256
    %260 = vset.pattern.permute.xlu0 0
    %261 = vperm.xlu0 %260, %v119
    %v262 = vpop.permute.xlu0 %261
    %265 = vset.pattern.permute.xlu0 0
    %266 = vperm.xlu0 %265, %v120
    %v267 = vpop.permute.xlu0 %266
    %270 = vset.pattern.permute.xlu0 0
    %271 = vperm.xlu0 %270, %v121
    %v272 = vpop.permute.xlu0 %271
    %275 = vset.pattern.permute.xlu0 0
    %276 = vperm.xlu0 %275, %v122
    %v277 = vpop.permute.xlu0 %276
    %280 = vset.pattern.permute.xlu0 0
    %281 = vperm.xlu0 %280, %v123
    %v282 = vpop.permute.xlu0 %281
    %285 = vset.pattern.permute.xlu0 0
    %286 = vperm.xlu0 %285, %v124
    %v287 = vpop.permute.xlu0 %286
    %290 = vset.pattern.permute.xlu0 0
    %291 = vperm.xlu0 %290, %v125
    %v292 = vpop.permute.xlu0 %291
    %295 = vset.pattern.permute.xlu0 0
    %296 = vperm.xlu0 %295, %v126
    %v297 = vpop.permute.xlu0 %296
    %300 = vset.pattern.permute.xlu0 0
    %301 = vperm.xlu0 %300, %v127
    %v302 = vpop.permute.xlu0 %301
    %305 = vset.pattern.permute.xlu0 0
    %306 = vperm.xlu0 %305, %v128
    %v307 = vpop.permute.xlu0 %306
    %310 = vset.pattern.permute.xlu0 0
    %311 = vperm.xlu0 %310, %v129
    %v312 = vpop.permute.xlu0 %311
    %315 = vset.pattern.permute.xlu0 0
    %316 = vperm.xlu0 %315, %v130
    %v317 = vpop.permute.xlu0 %316
    %320 = vset.pattern.permute.xlu0 0
    %321 = vperm.xlu0 %320, %v131
    %v322 = vpop.permute.xlu0 %321
    %325 = vset.pattern.permute.xlu0 0
    %326 = vperm.xlu0 %325, %v132
    %v327 = vpop.permute.xlu0 %326
    %330 = vset.pattern.permute.xlu0 0
    %331 = vperm.xlu0 %330, %v133
    %v332 = vpop.permute.xlu0 %331
    %335 = vset.pattern.permute.xlu0 0
    %336 = vperm.xlu0 %335, %v134
    %v337 = vpop.permute.xlu0 %336
    %340 = vset.pattern.permute.xlu0 0
    %341 = vperm.xlu0 %340, %v135
    %v342 = vpop.permute.xlu0 %341
    %345 = vset.pattern.permute.xlu0 0
    %346 = vperm.xlu0 %345, %v136
    %v347 = vpop.permute.xlu0 %346
    %350 = vset.pattern.permute.xlu0 0
    %351 = vperm.xlu0 %350, %v137
    %v352 = vpop.permute.xlu0 %351
    %355 = vset.pattern.permute.xlu0 0
    %356 = vperm.xlu0 %355, %v138
    %v357 = vpop.permute.xlu0 %356
    %360 = vset.pattern.permute.xlu0 0
    %361 = vperm.xlu0 %360, %v139
    %v362 = vpop.permute.xlu0 %361
    %365 = vset.pattern.permute.xlu0 0
    %366 = vperm.xlu0 %365, %v140
    %v367 = vpop.permute.xlu0 %366
    %370 = vset.pattern.permute.xlu0 0
    %371 = vperm.xlu0 %370, %v141
    %v372 = vpop.permute.xlu0 %371
    %375 = vset.pattern.permute.xlu0 0
    %376 = vperm.xlu0 %375, %v142
    %v377 = vpop.permute.xlu0 %376
    %380 = vset.pattern.permute.xlu0 0
    %381 = vperm.xlu0 %380, %v143
    %v382 = vpop.permute.xlu0 %381
    %385 = vset.pattern.permute.xlu0 0
    %386 = vperm.xlu0 %385, %v144
    %v387 = vpop.permute.xlu0 %386
    %390 = vset.pattern.permute.xlu0 0
    %391 = vperm.xlu0 %390, %v145
    %v392 = vpop.permute.xlu0 %391
    %395 = vset.pattern.permute.xlu0 0
    %396 = vperm.xlu0 %395, %v146
    %v397 = vpop.permute.xlu0 %396
    %400 = vset.pattern.permute.xlu0 0
    %401 = vperm.xlu0 %400, %v147
    %v402 = vpop.permute.xlu0 %401
    %405 = vset.pattern.permute.xlu0 0
    %406 = vperm.xlu0 %405, %v148
    %v407 = vpop.permute.xlu0 %406
    %410 = vset.pattern.permute.xlu0 0
    %411 = vperm.xlu0 %410, %v149
    %v412 = vpop.permute.xlu0 %411
    %415 = vset.pattern.permute.xlu0 0
    %416 = vperm.xlu0 %415, %v150
    %v417 = vpop.permute.xlu0 %416
    %420 = vset.pattern.permute.xlu0 0
    %421 = vperm.xlu0 %420, %v151
    %v422 = vpop.permute.xlu0 %421
    %425 = vset.pattern.permute.xlu0 0
    %426 = vperm.xlu0 %425, %v152
    %v427 = vpop.permute.xlu0 %426
    %430 = vset.pattern.permute.xlu0 0
    %431 = vperm.xlu0 %430, %v153
    %v432 = vpop.permute.xlu0 %431
    %435 = vset.pattern.permute.xlu0 0
    %436 = vperm.xlu0 %435, %v154
    %v437 = vpop.permute.xlu0 %436
    %440 = vset.pattern.permute.xlu0 0
    %441 = vperm.xlu0 %440, %v155
    %v442 = vpop.permute.xlu0 %441
    %445 = vset.pattern.permute.xlu0 0
    %446 = vperm.xlu0 %445, %v156
    %v447 = vpop.permute.xlu0 %446
    %450 = vset.pattern.permute.xlu0 0
    %451 = vperm.xlu0 %450, %v157
    %v452 = vpop.permute.xlu0 %451
    %455 = vset.pattern.permute.xlu0 0
    %456 = vperm.xlu0 %455, %v158
    %v457 = vpop.permute.xlu0 %456
    %460 = vset.pattern.permute.xlu0 0
    %461 = vperm.xlu0 %460, %v159
    %v462 = vpop.permute.xlu0 %461
    %465 = vset.pattern.permute.xlu0 0
    %466 = vperm.xlu0 %465, %v160
    %v467 = vpop.permute.xlu0 %466
    %470 = vset.pattern.permute.xlu0 0
    %471 = vperm.xlu0 %470, %v161
    %v472 = vpop.permute.xlu0 %471
    %475 = vset.pattern.permute.xlu0 0
    %476 = vperm.xlu0 %475, %v162
    %v477 = vpop.permute.xlu0 %476
    %480 = vset.pattern.permute.xlu0 0
    %481 = vperm.xlu0 %480, %v163
    %v482 = vpop.permute.xlu0 %481
    %vm484 = vcmask 23552
    %v486 = vsel %vm484, %v35, 0
    %v489 = vsel %vm484, %v36, 0
    %v492 = vsel %vm484, %v37, 0
    %v495 = vsel %vm484, %v38, 0
    %v498 = vsel %vm484, %v39, 0
    %v501 = vsel %vm484, %v40, 0
    %v504 = vsel %vm484, %v41, 0
    %v507 = vsel %vm484, %v42, 0
    %v510 = vsel %vm484, %v43, 0
    %v513 = vsel %vm484, %v44, 0
    %v516 = vsel %vm484, %v45, 0
    %v519 = vsel %vm484, %v46, 0
    %v522 = vsel %vm484, %v47, 0
    %v525 = vsel %vm484, %v48, 0
    %v528 = vsel %vm484, %v49, 0
    %v531 = vsel %vm484, %v50, 0
    %v534 = vsel %vm484, %v51, 0
    %v537 = vsel %vm484, %v52, 0
    %v540 = vsel %vm484, %v53, 0
    %v543 = vsel %vm484, %v54, 0
    %v546 = vsel %vm484, %v55, 0
    %v549 = vsel %vm484, %v56, 0
    %v552 = vsel %vm484, %v57, 0
    %v555 = vsel %vm484, %v58, 0
    %v558 = vsel %vm484, %v59, 0
    %v561 = vsel %vm484, %v60, 0
    %v564 = vsel %vm484, %v61, 0
    %v567 = vsel %vm484, %v62, 0
    %v570 = vsel %vm484, %v63, 0
    %v573 = vsel %vm484, %v64, 0
    %v576 = vsel %vm484, %v65, 0
    %v579 = vsel %vm484, %v66, 0
    %v582 = vsel %vm484, %v67, 0
    %v585 = vsel %vm484, %v68, 0
    %v588 = vsel %vm484, %v69, 0
    %v591 = vsel %vm484, %v70, 0
    %v594 = vsel %vm484, %v71, 0
    %v597 = vsel %vm484, %v72, 0
    %v600 = vsel %vm484, %v73, 0
    %v603 = vsel %vm484, %v74, 0
    %v606 = vsel %vm484, %v75, 0
    %v609 = vsel %vm484, %v76, 0
    %v612 = vsel %vm484, %v77, 0
    %v615 = vsel %vm484, %v78, 0
    %v618 = vsel %vm484, %v79, 0
    %v621 = vsel %vm484, %v80, 0
    %v624 = vsel %vm484, %v81, 0
    %v627 = vsel %vm484, %v82, 0
    %v630 = vsel %vm484, %v83, 0
    %v633 = vsel %vm484, %v84, 0
    %v636 = vsel %vm484, %v85, 0
    %v639 = vsel %vm484, %v86, 0
    %v642 = vsel %vm484, %v87, 0
    %v645 = vsel %vm484, %v88, 0
    %v648 = vsel %vm484, %v89, 0
    %v651 = vsel %vm484, %v90, 0
    %v654 = vsel %vm484, %v91, 0
    %v657 = vsel %vm484, %v92, 0
    %v660 = vsel %vm484, %v93, 0
    %v663 = vsel %vm484, %v94, 0
    %v666 = vsel %vm484, %v95, 0
    %v669 = vsel %vm484, %v96, 0
    %v672 = vsel %vm484, %v97, 0
    %v675 = vsel %vm484, %v98, 0
    %vm677 = vcmask 1042432
    %v679 = vsel %vm677, %v99, 0
    %681 = vmatprep.subr.mxu0 0.0
    %682 = vmatpush1.msra.mxu0 0.0
    %683 = vmatprep.subr.mxu0 0.0
    %684 = vmatpush1.msra.mxu0 0.0
    %685 = vmatprep.subr.mxu0 0.0
    %686 = vmatpush1.msra.mxu0 0.0
    %687 = vmatprep.subr.mxu0 0.0
    %688 = vmatpush1.msra.mxu0 0.0
    %689 = vmatprep.subr.mxu0 0.0
    %690 = vmatpush1.msra.mxu0 0.0
    %691 = vmatprep.subr.mxu0 0.0
    %692 = vmatpush1.msra.mxu0 0.0
    %693 = vmatprep.subr.mxu0 0.0
    %694 = vmatpush1.msra.mxu0 0.0
    %695 = vmatprep.subr.mxu0 0.0
    %696 = vmatpush1.msra.mxu0 0.0
    %697 = vmatprep.subr.mxu0 0.0
    %698 = vmatpush1.msra.mxu0 0.0
    %699 = vmatprep.subr.mxu0 0.0
    %700 = vmatpush1.msra.mxu0 0.0
    %701 = vmatprep.subr.mxu0 0.0
    %702 = vmatpush1.msra.mxu0 0.0
    %703 = vmatprep.subr.mxu0 0.0
    %704 = vmatpush1.msra.mxu0 0.0
    %705 = vmatprep.subr.mxu0 0.0
    %706 = vmatpush1.msra.mxu0 0.0
    %707 = vmatprep.subr.mxu0 0.0
    %708 = vmatpush1.msra.mxu0 0.0
    %709 = vmatprep.subr.mxu0 0.0
    %710 = vmatpush1.msra.mxu0 0.0
    %711 = vmatprep.subr.mxu0 0.0
    %712 = vmatpush1.msra.mxu0 %v679
    %713 = vmatprep.subr.mxu0 0.0
    %714 = vmatpush2.msra.mxu0 0.0
    %715 = vmatprep.subr.mxu0 0.0
    %716 = vmatpush2.msra.mxu0 0.0
    %717 = vmatprep.subr.mxu0 0.0
    %718 = vmatpush2.msra.mxu0 0.0
    %719 = vmatprep.subr.mxu0 0.0
    %720 = vmatpush2.msra.mxu0 0.0
    %721 = vmatprep.subr.mxu0 0.0
    %722 = vmatpush2.msra.mxu0 0.0
    %723 = vmatprep.subr.mxu0 0.0
    %724 = vmatpush2.msra.mxu0 0.0
    %725 = vmatprep.subr.mxu0 0.0
    %726 = vmatpush2.msra.mxu0 0.0
    %727 = vmatprep.subr.mxu0 0.0
    %728 = vmatpush2.msra.mxu0 0.0
    %729 = vmatprep.subr.mxu0 0.0
    %730 = vmatpush2.msra.mxu0 0.0
    %731 = vmatprep.subr.mxu0 0.0
    %732 = vmatpush2.msra.mxu0 0.0
    %733 = vmatprep.subr.mxu0 0.0
    %734 = vmatpush2.msra.mxu0 0.0
    %735 = vmatprep.subr.mxu0 0.0
    %736 = vmatpush2.msra.mxu0 0.0
    %737 = vmatprep.subr.mxu0 0.0
    %738 = vmatpush2.msra.mxu0 0.0
    %739 = vmatprep.subr.mxu0 0.0
    %740 = vmatpush2.msra.mxu0 0.0
    %741 = vmatprep.subr.mxu0 0.0
    %742 = vmatpush2.msra.mxu0 0.0
    %743 = vmatprep.subr.mxu0 0.0
    %744 = vmatpush2.msra.mxu0 0.0
    %745 = vmatprep.mubr.f32.mxu0 0.0
    %746 = vmatmul.mubr.f32.gmra.mxu0 %v486
    %v747 = vpop.f32.mrf.mxu0
    %v748 = vadd.f32 %v167, %v747
    %v749 = vpop.f32.mrf.mxu0
    %750 = vmatprep.mubr.f32.mxu0 0.0
    %751 = vmatmul.mubr.f32.gmra.mxu0 %v489
    %v752 = vpop.f32.mrf.mxu0
    %v753 = vadd.f32 %v172, %v752
    %v754 = vpop.f32.mrf.mxu0
    %755 = vmatprep.mubr.f32.mxu0 0.0
    %756 = vmatmul.mubr.f32.gmra.mxu0 %v492
    %v757 = vpop.f32.mrf.mxu0
    %v758 = vadd.f32 %v177, %v757
    %v759 = vpop.f32.mrf.mxu0
    %760 = vmatprep.mubr.f32.mxu0 0.0
    %761 = vmatmul.mubr.f32.gmra.mxu0 %v495
    %v762 = vpop.f32.mrf.mxu0
    %v763 = vadd.f32 %v182, %v762
    %v764 = vpop.f32.mrf.mxu0
    %765 = vmatprep.mubr.f32.mxu0 0.0
    %766 = vmatmul.mubr.f32.gmra.mxu0 %v498
    %v767 = vpop.f32.mrf.mxu0
    %v768 = vadd.f32 %v187, %v767
    %v769 = vpop.f32.mrf.mxu0
    %770 = vmatprep.mubr.f32.mxu0 0.0
    %771 = vmatmul.mubr.f32.gmra.mxu0 %v501
    %v772 = vpop.f32.mrf.mxu0
    %v773 = vadd.f32 %v192, %v772
    %v774 = vpop.f32.mrf.mxu0
    %775 = vmatprep.mubr.f32.mxu0 0.0
    %776 = vmatmul.mubr.f32.gmra.mxu0 %v504
    %v777 = vpop.f32.mrf.mxu0
    %v778 = vadd.f32 %v197, %v777
    %v779 = vpop.f32.mrf.mxu0
    %780 = vmatprep.mubr.f32.mxu0 0.0
    %781 = vmatmul.mubr.f32.gmra.mxu0 %v507
    %v782 = vpop.f32.mrf.mxu0
    %v783 = vadd.f32 %v202, %v782
    %v784 = vpop.f32.mrf.mxu0
    %785 = vmatprep.mubr.f32.mxu0 0.0
    %786 = vmatmul.mubr.f32.gmra.mxu0 %v510
    %v787 = vpop.f32.mrf.mxu0
    %v788 = vadd.f32 %v207, %v787
    %v789 = vpop.f32.mrf.mxu0
    %790 = vmatprep.mubr.f32.mxu0 0.0
    %791 = vmatmul.mubr.f32.gmra.mxu0 %v513
    %v792 = vpop.f32.mrf.mxu0
    %v793 = vadd.f32 %v212, %v792
    %v794 = vpop.f32.mrf.mxu0
    %795 = vmatprep.mubr.f32.mxu0 0.0
    %796 = vmatmul.mubr.f32.gmra.mxu0 %v516
    %v797 = vpop.f32.mrf.mxu0
    %v798 = vadd.f32 %v217, %v797
    %v799 = vpop.f32.mrf.mxu0
    %800 = vmatprep.mubr.f32.mxu0 0.0
    %801 = vmatmul.mubr.f32.gmra.mxu0 %v519
    %v802 = vpop.f32.mrf.mxu0
    %v803 = vadd.f32 %v222, %v802
    %v804 = vpop.f32.mrf.mxu0
    %805 = vmatprep.mubr.f32.mxu0 0.0
    %806 = vmatmul.mubr.f32.gmra.mxu0 %v522
    %v807 = vpop.f32.mrf.mxu0
    %v808 = vadd.f32 %v227, %v807
    %v809 = vpop.f32.mrf.mxu0
    %810 = vmatprep.mubr.f32.mxu0 0.0
    %811 = vmatmul.mubr.f32.gmra.mxu0 %v525
    %v812 = vpop.f32.mrf.mxu0
    %v813 = vadd.f32 %v232, %v812
    %v814 = vpop.f32.mrf.mxu0
    %815 = vmatprep.mubr.f32.mxu0 0.0
    %816 = vmatmul.mubr.f32.gmra.mxu0 %v528
    %v817 = vpop.f32.mrf.mxu0
    %v818 = vadd.f32 %v237, %v817
    %v819 = vpop.f32.mrf.mxu0
    %820 = vmatprep.mubr.f32.mxu0 0.0
    %821 = vmatmul.mubr.f32.gmra.mxu0 %v531
    %v822 = vpop.f32.mrf.mxu0
    %v823 = vadd.f32 %v242, %v822
    %v824 = vpop.f32.mrf.mxu0
    %825 = vmatprep.mubr.f32.mxu0 0.0
    %826 = vmatmul.mubr.f32.gmra.mxu0 %v534
    %v827 = vpop.f32.mrf.mxu0
    %v828 = vadd.f32 %v247, %v827
    %v829 = vpop.f32.mrf.mxu0
    %830 = vmatprep.mubr.f32.mxu0 0.0
    %831 = vmatmul.mubr.f32.gmra.mxu0 %v537
    %v832 = vpop.f32.mrf.mxu0
    %v833 = vadd.f32 %v252, %v832
    %v834 = vpop.f32.mrf.mxu0
    %835 = vmatprep.mubr.f32.mxu0 0.0
    %836 = vmatmul.mubr.f32.gmra.mxu0 %v540
    %v837 = vpop.f32.mrf.mxu0
    %v838 = vadd.f32 %v257, %v837
    %v839 = vpop.f32.mrf.mxu0
    %840 = vmatprep.mubr.f32.mxu0 0.0
    %841 = vmatmul.mubr.f32.gmra.mxu0 %v543
    %v842 = vpop.f32.mrf.mxu0
    %v843 = vadd.f32 %v262, %v842
    %v844 = vpop.f32.mrf.mxu0
    %845 = vmatprep.mubr.f32.mxu0 0.0
    %846 = vmatmul.mubr.f32.gmra.mxu0 %v546
    %v847 = vpop.f32.mrf.mxu0
    %v848 = vadd.f32 %v267, %v847
    %v849 = vpop.f32.mrf.mxu0
    %850 = vmatprep.mubr.f32.mxu0 0.0
    %851 = vmatmul.mubr.f32.gmra.mxu0 %v549
    %v852 = vpop.f32.mrf.mxu0
    %v853 = vadd.f32 %v272, %v852
    %v854 = vpop.f32.mrf.mxu0
    %855 = vmatprep.mubr.f32.mxu0 0.0
    %856 = vmatmul.mubr.f32.gmra.mxu0 %v552
    %v857 = vpop.f32.mrf.mxu0
    %v858 = vadd.f32 %v277, %v857
    %v859 = vpop.f32.mrf.mxu0
    %860 = vmatprep.mubr.f32.mxu0 0.0
    %861 = vmatmul.mubr.f32.gmra.mxu0 %v555
    %v862 = vpop.f32.mrf.mxu0
    %v863 = vadd.f32 %v282, %v862
    %v864 = vpop.f32.mrf.mxu0
    %865 = vmatprep.mubr.f32.mxu0 0.0
    %866 = vmatmul.mubr.f32.gmra.mxu0 %v558
    %v867 = vpop.f32.mrf.mxu0
    %v868 = vadd.f32 %v287, %v867
    %v869 = vpop.f32.mrf.mxu0
    %870 = vmatprep.mubr.f32.mxu0 0.0
    %871 = vmatmul.mubr.f32.gmra.mxu0 %v561
    %v872 = vpop.f32.mrf.mxu0
    %v873 = vadd.f32 %v292, %v872
    %v874 = vpop.f32.mrf.mxu0
    %875 = vmatprep.mubr.f32.mxu0 0.0
    %876 = vmatmul.mubr.f32.gmra.mxu0 %v564
    %v877 = vpop.f32.mrf.mxu0
    %v878 = vadd.f32 %v297, %v877
    %v879 = vpop.f32.mrf.mxu0
    %880 = vmatprep.mubr.f32.mxu0 0.0
    %881 = vmatmul.mubr.f32.gmra.mxu0 %v567
    %v882 = vpop.f32.mrf.mxu0
    %v883 = vadd.f32 %v302, %v882
    %v884 = vpop.f32.mrf.mxu0
    %885 = vmatprep.mubr.f32.mxu0 0.0
    %886 = vmatmul.mubr.f32.gmra.mxu0 %v570
    %v887 = vpop.f32.mrf.mxu0
    %v888 = vadd.f32 %v307, %v887
    %v889 = vpop.f32.mrf.mxu0
    %890 = vmatprep.mubr.f32.mxu0 0.0
    %891 = vmatmul.mubr.f32.gmra.mxu0 %v573
    %v892 = vpop.f32.mrf.mxu0
    %v893 = vadd.f32 %v312, %v892
    %v894 = vpop.f32.mrf.mxu0
    %895 = vmatprep.mubr.f32.mxu0 0.0
    %896 = vmatmul.mubr.f32.gmra.mxu0 %v576
    %v897 = vpop.f32.mrf.mxu0
    %v898 = vadd.f32 %v317, %v897
    %v899 = vpop.f32.mrf.mxu0
    %900 = vmatprep.mubr.f32.mxu0 0.0
    %901 = vmatmul.mubr.f32.gmra.mxu0 %v579
    %v902 = vpop.f32.mrf.mxu0
    %v903 = vadd.f32 %v322, %v902
    %v904 = vpop.f32.mrf.mxu0
    %905 = vmatprep.mubr.f32.mxu0 0.0
    %906 = vmatmul.mubr.f32.gmra.mxu0 %v582
    %v907 = vpop.f32.mrf.mxu0
    %v908 = vadd.f32 %v327, %v907
    %v909 = vpop.f32.mrf.mxu0
    %910 = vmatprep.mubr.f32.mxu0 0.0
    %911 = vmatmul.mubr.f32.gmra.mxu0 %v585
    %v912 = vpop.f32.mrf.mxu0
    %v913 = vadd.f32 %v332, %v912
    %v914 = vpop.f32.mrf.mxu0
    %915 = vmatprep.mubr.f32.mxu0 0.0
    %916 = vmatmul.mubr.f32.gmra.mxu0 %v588
    %v917 = vpop.f32.mrf.mxu0
    %v918 = vadd.f32 %v337, %v917
    %v919 = vpop.f32.mrf.mxu0
    %920 = vmatprep.mubr.f32.mxu0 0.0
    %921 = vmatmul.mubr.f32.gmra.mxu0 %v591
    %v922 = vpop.f32.mrf.mxu0
    %v923 = vadd.f32 %v342, %v922
    %v924 = vpop.f32.mrf.mxu0
    %925 = vmatprep.mubr.f32.mxu0 0.0
    %926 = vmatmul.mubr.f32.gmra.mxu0 %v594
    %v927 = vpop.f32.mrf.mxu0
    %v928 = vadd.f32 %v347, %v927
    %v929 = vpop.f32.mrf.mxu0
    %930 = vmatprep.mubr.f32.mxu0 0.0
    %931 = vmatmul.mubr.f32.gmra.mxu0 %v597
    %v932 = vpop.f32.mrf.mxu0
    %v933 = vadd.f32 %v352, %v932
    %v934 = vpop.f32.mrf.mxu0
    %935 = vmatprep.mubr.f32.mxu0 0.0
    %936 = vmatmul.mubr.f32.gmra.mxu0 %v600
    %v937 = vpop.f32.mrf.mxu0
    %v938 = vadd.f32 %v357, %v937
    %v939 = vpop.f32.mrf.mxu0
    %940 = vmatprep.mubr.f32.mxu0 0.0
    %941 = vmatmul.mubr.f32.gmra.mxu0 %v603
    %v942 = vpop.f32.mrf.mxu0
    %v943 = vadd.f32 %v362, %v942
    %v944 = vpop.f32.mrf.mxu0
    %945 = vmatprep.mubr.f32.mxu0 0.0
    %946 = vmatmul.mubr.f32.gmra.mxu0 %v606
    %v947 = vpop.f32.mrf.mxu0
    %v948 = vadd.f32 %v367, %v947
    %v949 = vpop.f32.mrf.mxu0
    %950 = vmatprep.mubr.f32.mxu0 0.0
    %951 = vmatmul.mubr.f32.gmra.mxu0 %v609
    %v952 = vpop.f32.mrf.mxu0
    %v953 = vadd.f32 %v372, %v952
    %v954 = vpop.f32.mrf.mxu0
    %955 = vmatprep.mubr.f32.mxu0 0.0
    %956 = vmatmul.mubr.f32.gmra.mxu0 %v612
    %v957 = vpop.f32.mrf.mxu0
    %v958 = vadd.f32 %v377, %v957
    %v959 = vpop.f32.mrf.mxu0
    %960 = vmatprep.mubr.f32.mxu0 0.0
    %961 = vmatmul.mubr.f32.gmra.mxu0 %v615
    %v962 = vpop.f32.mrf.mxu0
    %v963 = vadd.f32 %v382, %v962
    %v964 = vpop.f32.mrf.mxu0
    %965 = vmatprep.mubr.f32.mxu0 0.0
    %966 = vmatmul.mubr.f32.gmra.mxu0 %v618
    %v967 = vpop.f32.mrf.mxu0
    %v968 = vadd.f32 %v387, %v967
    %v969 = vpop.f32.mrf.mxu0
    %970 = vmatprep.mubr.f32.mxu0 0.0
    %971 = vmatmul.mubr.f32.gmra.mxu0 %v621
    %v972 = vpop.f32.mrf.mxu0
    %v973 = vadd.f32 %v392, %v972
    %v974 = vpop.f32.mrf.mxu0
    %975 = vmatprep.mubr.f32.mxu0 0.0
    %976 = vmatmul.mubr.f32.gmra.mxu0 %v624
    %v977 = vpop.f32.mrf.mxu0
    %v978 = vadd.f32 %v397, %v977
    %v979 = vpop.f32.mrf.mxu0
    %980 = vmatprep.mubr.f32.mxu0 0.0
    %981 = vmatmul.mubr.f32.gmra.mxu0 %v627
    %v982 = vpop.f32.mrf.mxu0
    %v983 = vadd.f32 %v402, %v982
    %v984 = vpop.f32.mrf.mxu0
    %985 = vmatprep.mubr.f32.mxu0 0.0
    %986 = vmatmul.mubr.f32.gmra.mxu0 %v630
    %v987 = vpop.f32.mrf.mxu0
    %v988 = vadd.f32 %v407, %v987
    %v989 = vpop.f32.mrf.mxu0
    %990 = vmatprep.mubr.f32.mxu0 0.0
    %991 = vmatmul.mubr.f32.gmra.mxu0 %v633
    %v992 = vpop.f32.mrf.mxu0
    %v993 = vadd.f32 %v412, %v992
    %v994 = vpop.f32.mrf.mxu0
    %995 = vmatprep.mubr.f32.mxu0 0.0
    %996 = vmatmul.mubr.f32.gmra.mxu0 %v636
    %v997 = vpop.f32.mrf.mxu0
    %v998 = vadd.f32 %v417, %v997
    %v999 = vpop.f32.mrf.mxu0
    %1000 = vmatprep.mubr.f32.mxu0 0.0
    %1001 = vmatmul.mubr.f32.gmra.mxu0 %v639
    %v1002 = vpop.f32.mrf.mxu0
    %v1003 = vadd.f32 %v422, %v1002
    %v1004 = vpop.f32.mrf.mxu0
    %1005 = vmatprep.mubr.f32.mxu0 0.0
    %1006 = vmatmul.mubr.f32.gmra.mxu0 %v642
    %v1007 = vpop.f32.mrf.mxu0
    %v1008 = vadd.f32 %v427, %v1007
    %v1009 = vpop.f32.mrf.mxu0
    %1010 = vmatprep.mubr.f32.mxu0 0.0
    %1011 = vmatmul.mubr.f32.gmra.mxu0 %v645
    %v1012 = vpop.f32.mrf.mxu0
    %v1013 = vadd.f32 %v432, %v1012
    %v1014 = vpop.f32.mrf.mxu0
    %1015 = vmatprep.mubr.f32.mxu0 0.0
    %1016 = vmatmul.mubr.f32.gmra.mxu0 %v648
    %v1017 = vpop.f32.mrf.mxu0
    %v1018 = vadd.f32 %v437, %v1017
    %v1019 = vpop.f32.mrf.mxu0
    %1020 = vmatprep.mubr.f32.mxu0 0.0
    %1021 = vmatmul.mubr.f32.gmra.mxu0 %v651
    %v1022 = vpop.f32.mrf.mxu0
    %v1023 = vadd.f32 %v442, %v1022
    %v1024 = vpop.f32.mrf.mxu0
    %1025 = vmatprep.mubr.f32.mxu0 0.0
    %1026 = vmatmul.mubr.f32.gmra.mxu0 %v654
    %v1027 = vpop.f32.mrf.mxu0
    %v1028 = vadd.f32 %v447, %v1027
    %v1029 = vpop.f32.mrf.mxu0
    %1030 = vmatprep.mubr.f32.mxu0 0.0
    %1031 = vmatmul.mubr.f32.gmra.mxu0 %v657
    %v1032 = vpop.f32.mrf.mxu0
    %v1033 = vadd.f32 %v452, %v1032
    %v1034 = vpop.f32.mrf.mxu0
    %1035 = vmatprep.mubr.f32.mxu0 0.0
    %1036 = vmatmul.mubr.f32.gmra.mxu0 %v660
    %v1037 = vpop.f32.mrf.mxu0
    %v1038 = vadd.f32 %v457, %v1037
    %v1039 = vpop.f32.mrf.mxu0
    %1040 = vmatprep.mubr.f32.mxu0 0.0
    %1041 = vmatmul.mubr.f32.gmra.mxu0 %v663
    %v1042 = vpop.f32.mrf.mxu0
    %v1043 = vadd.f32 %v462, %v1042
    %v1044 = vpop.f32.mrf.mxu0
    %1045 = vmatprep.mubr.f32.mxu0 0.0
    %1046 = vmatmul.mubr.f32.gmra.mxu0 %v666
    %v1047 = vpop.f32.mrf.mxu0
    %v1048 = vadd.f32 %v467, %v1047
    %v1049 = vpop.f32.mrf.mxu0
    %1050 = vmatprep.mubr.f32.mxu0 0.0
    %1051 = vmatmul.mubr.f32.gmra.mxu0 %v669
    %v1052 = vpop.f32.mrf.mxu0
    %v1053 = vadd.f32 %v472, %v1052
    %v1054 = vpop.f32.mrf.mxu0
    %1055 = vmatprep.mubr.f32.mxu0 0.0
    %1056 = vmatmul.mubr.f32.gmra.mxu0 %v672
    %v1057 = vpop.f32.mrf.mxu0
    %v1058 = vadd.f32 %v477, %v1057
    %v1059 = vpop.f32.mrf.mxu0
    %1060 = vmatprep.mubr.f32.mxu0 0.0
    %1061 = vmatmul.mubr.f32.gmra.mxu0 %v675
    %v1062 = vpop.f32.mrf.mxu0
    %v1063 = vadd.f32 %v482, %v1062
    %v1064 = vpop.f32.mrf.mxu0
    %1065 = vdwg.mxu0
    %v1066 = vmax.f32 %v748, 0.0
    %v1067 = vmax.f32 %v753, 0.0
    %v1068 = vmax.f32 %v758, 0.0
    %v1069 = vmax.f32 %v763, 0.0
    %v1070 = vmax.f32 %v768, 0.0
    %v1071 = vmax.f32 %v773, 0.0
    %v1072 = vmax.f32 %v778, 0.0
    %v1073 = vmax.f32 %v783, 0.0
    %v1074 = vmax.f32 %v788, 0.0
    %v1075 = vmax.f32 %v793, 0.0
    %v1076 = vmax.f32 %v798, 0.0
    %v1077 = vmax.f32 %v803, 0.0
    %v1078 = vmax.f32 %v808, 0.0
    %v1079 = vmax.f32 %v813, 0.0
    %v1080 = vmax.f32 %v818, 0.0
    %v1081 = vmax.f32 %v823, 0.0
    %v1082 = vmax.f32 %v828, 0.0
    %v1083 = vmax.f32 %v833, 0.0
    %v1084 = vmax.f32 %v838, 0.0
    %v1085 = vmax.f32 %v843, 0.0
    %v1086 = vmax.f32 %v848, 0.0
    %v1087 = vmax.f32 %v853, 0.0
    %v1088 = vmax.f32 %v858, 0.0
    %v1089 = vmax.f32 %v863, 0.0
    %v1090 = vmax.f32 %v868, 0.0
    %v1091 = vmax.f32 %v873, 0.0
    %v1092 = vmax.f32 %v878, 0.0
    %v1093 = vmax.f32 %v883, 0.0
    %v1094 = vmax.f32 %v888, 0.0
    %v1095 = vmax.f32 %v893, 0.0
    %v1096 = vmax.f32 %v898, 0.0
    %v1097 = vmax.f32 %v903, 0.0
    %v1098 = vmax.f32 %v908, 0.0
    %v1099 = vmax.f32 %v913, 0.0
    %v1100 = vmax.f32 %v918, 0.0
    %v1101 = vmax.f32 %v923, 0.0
    %v1102 = vmax.f32 %v928, 0.0
    %v1103 = vmax.f32 %v933, 0.0
    %v1104 = vmax.f32 %v938, 0.0
    %v1105 = vmax.f32 %v943, 0.0
    %v1106 = vmax.f32 %v948, 0.0
    %v1107 = vmax.f32 %v953, 0.0
    %v1108 = vmax.f32 %v958, 0.0
    %v1109 = vmax.f32 %v963, 0.0
    %v1110 = vmax.f32 %v968, 0.0
    %v1111 = vmax.f32 %v973, 0.0
    %v1112 = vmax.f32 %v978, 0.0
    %v1113 = vmax.f32 %v983, 0.0
    %v1114 = vmax.f32 %v988, 0.0
    %v1115 = vmax.f32 %v993, 0.0
    %v1116 = vmax.f32 %v998, 0.0
    %v1117 = vmax.f32 %v1003, 0.0
    %v1118 = vmax.f32 %v1008, 0.0
    %v1119 = vmax.f32 %v1013, 0.0
    %v1120 = vmax.f32 %v1018, 0.0
    %v1121 = vmax.f32 %v1023, 0.0
    %v1122 = vmax.f32 %v1028, 0.0
    %v1123 = vmax.f32 %v1033, 0.0
    %v1124 = vmax.f32 %v1038, 0.0
    %v1125 = vmax.f32 %v1043, 0.0
    %v1126 = vmax.f32 %v1048, 0.0
    %v1127 = vmax.f32 %v1053, 0.0
    %v1128 = vmax.f32 %v1058, 0.0
    %v1129 = vmax.f32 %v1063, 0.0
    %v1130 = vld [vmem:[%s4] sm:$0xff]
    %v1131 = vld [vmem:[%s4 + $0x8] sm:$0xff]
    %v1132 = vld [vmem:[%s4 + $0x10] sm:$0xff]
    %v1133 = vld [vmem:[%s4 + $0x18] sm:$0xff]
    %v1134 = vld [vmem:[%s4 + $0x20] sm:$0xff]
    %v1135 = vld [vmem:[%s4 + $0x28] sm:$0xff]
    %v1136 = vld [vmem:[%s4 + $0x30] sm:$0xff]
    %v1137 = vld [vmem:[%s4 + $0x38] sm:$0xff]
    %v1138 = vld [vmem:[%s4 + $0x40] sm:$0xff]
    %v1139 = vld [vmem:[%s4 + $0x48] sm:$0xff]
    %v1140 = vld [vmem:[%s4 + $0x50] sm:$0xff]
    %v1141 = vld [vmem:[%s4 + $0x58] sm:$0xff]
    %v1142 = vld [vmem:[%s4 + $0x60] sm:$0xff]
    %v1143 = vld [vmem:[%s4 + $0x68] sm:$0xff]
    %v1144 = vld [vmem:[%s4 + $0x70] sm:$0xff]
    %v1145 = vld [vmem:[%s4 + $0x78] sm:$0xff]
    %v1146 = vld [vmem:[%s4 + $0x80] sm:$0xff]
    %v1147 = vld [vmem:[%s4 + $0x88] sm:$0xff]
    %v1148 = vld [vmem:[%s4 + $0x90] sm:$0xff]
    %v1149 = vld [vmem:[%s4 + $0x98] sm:$0xff]
    %v1150 = vld [vmem:[%s4 + $0xa0] sm:$0xff]
    %v1151 = vld [vmem:[%s4 + $0xa8] sm:$0xff]
    %v1152 = vld [vmem:[%s4 + $0xb0] sm:$0xff]
    %v1153 = vld [vmem:[%s4 + $0xb8] sm:$0xff]
    %v1154 = vld [vmem:[%s4 + $0xc0] sm:$0xff]
    %v1155 = vld [vmem:[%s4 + $0xc8] sm:$0xff]
    %v1156 = vld [vmem:[%s4 + $0xd0] sm:$0xff]
    %v1157 = vld [vmem:[%s4 + $0xd8] sm:$0xff]
    %v1158 = vld [vmem:[%s4 + $0xe0] sm:$0xff]
    %v1159 = vld [vmem:[%s4 + $0xe8] sm:$0xff]
    %v1160 = vld [vmem:[%s4 + $0xf0] sm:$0xff]
    %v1161 = vld [vmem:[%s4 + $0xf8] sm:$0xff]
    %v1162 = vld [vmem:[%s4 + $0x100] sm:$0xff]
    %v1163 = vld [vmem:[%s4 + $0x108] sm:$0xff]
    %v1164 = vld [vmem:[%s4 + $0x110] sm:$0xff]
    %v1165 = vld [vmem:[%s4 + $0x118] sm:$0xff]
    %v1166 = vld [vmem:[%s4 + $0x120] sm:$0xff]
    %v1167 = vld [vmem:[%s4 + $0x128] sm:$0xff]
    %v1168 = vld [vmem:[%s4 + $0x130] sm:$0xff]
    %v1169 = vld [vmem:[%s4 + $0x138] sm:$0xff]
    %v1170 = vld [vmem:[%s4 + $0x140] sm:$0xff]
    %v1171 = vld [vmem:[%s4 + $0x148] sm:$0xff]
    %v1172 = vld [vmem:[%s4 + $0x150] sm:$0xff]
    %v1173 = vld [vmem:[%s4 + $0x158] sm:$0xff]
    %v1174 = vld [vmem:[%s4 + $0x160] sm:$0xff]
    %v1175 = vld [vmem:[%s4 + $0x168] sm:$0xff]
    %v1176 = vld [vmem:[%s4 + $0x170] sm:$0xff]
    %v1177 = vld [vmem:[%s4 + $0x178] sm:$0xff]
    %v1178 = vld [vmem:[%s4 + $0x180] sm:$0xff]
    %v1179 = vld [vmem:[%s4 + $0x188] sm:$0xff]
    %v1180 = vld [vmem:[%s4 + $0x190] sm:$0xff]
    %v1181 = vld [vmem:[%s4 + $0x198] sm:$0xff]
    %v1182 = vld [vmem:[%s4 + $0x1a0] sm:$0xff]
    %v1183 = vld [vmem:[%s4 + $0x1a8] sm:$0xff]
    %v1184 = vld [vmem:[%s4 + $0x1b0] sm:$0xff]
    %v1185 = vld [vmem:[%s4 + $0x1b8] sm:$0xff]
    %v1186 = vld [vmem:[%s4 + $0x1c0] sm:$0xff]
    %v1187 = vld [vmem:[%s4 + $0x1c8] sm:$0xff]
    %v1188 = vld [vmem:[%s4 + $0x1d0] sm:$0xff]
    %v1189 = vld [vmem:[%s4 + $0x1d8] sm:$0xff]
    %v1190 = vld [vmem:[%s4 + $0x1e0] sm:$0xff]
    %v1191 = vld [vmem:[%s4 + $0x1e8] sm:$0xff]
    %v1192 = vld [vmem:[%s4 + $0x1f0] sm:$0xff]
    %v1193 = vld [vmem:[%s4 + $0x1f8] sm:$0xff]
    %v1194 = vld [vmem:[%s4 + $0x200] sm:$0xff]
    %v1195 = vld [vmem:[%s4 + $0x208] sm:$0xff]
    %v1196 = vld [vmem:[%s4 + $0x210] sm:$0xff]
    %v1197 = vld [vmem:[%s4 + $0x218] sm:$0xff]
    %v1198 = vld [vmem:[%s4 + $0x220] sm:$0xff]
    %v1199 = vld [vmem:[%s4 + $0x228] sm:$0xff]
    %v1200 = vld [vmem:[%s4 + $0x230] sm:$0xff]
    %v1201 = vld [vmem:[%s4 + $0x238] sm:$0xff]
    %v1202 = vld [vmem:[%s4 + $0x240] sm:$0xff]
    %v1203 = vld [vmem:[%s4 + $0x248] sm:$0xff]
    %v1204 = vld [vmem:[%s4 + $0x250] sm:$0xff]
    %v1205 = vld [vmem:[%s4 + $0x258] sm:$0xff]
    %v1206 = vld [vmem:[%s4 + $0x260] sm:$0xff]
    %v1207 = vld [vmem:[%s4 + $0x268] sm:$0xff]
    %v1208 = vld [vmem:[%s4 + $0x270] sm:$0xff]
    %v1209 = vld [vmem:[%s4 + $0x278] sm:$0xff]
    %v1210 = vld [vmem:[%s4 + $0x280] sm:$0xff]
    %v1211 = vld [vmem:[%s4 + $0x288] sm:$0xff]
    %v1212 = vld [vmem:[%s4 + $0x290] sm:$0xff]
    %v1213 = vld [vmem:[%s4 + $0x298] sm:$0xff]
    %v1214 = vld [vmem:[%s4 + $0x2a0] sm:$0xff]
    %v1215 = vld [vmem:[%s4 + $0x2a8] sm:$0xff]
    %v1216 = vld [vmem:[%s4 + $0x2b0] sm:$0xff]
    %v1217 = vld [vmem:[%s4 + $0x2b8] sm:$0xff]
    %v1218 = vld [vmem:[%s4 + $0x2c0] sm:$0xff]
    %v1219 = vld [vmem:[%s4 + $0x2c8] sm:$0xff]
    %v1220 = vld [vmem:[%s4 + $0x2d0] sm:$0xff]
    %v1221 = vld [vmem:[%s4 + $0x2d8] sm:$0xff]
    %v1222 = vld [vmem:[%s4 + $0x2e0] sm:$0xff]
    %v1223 = vld [vmem:[%s4 + $0x2e8] sm:$0xff]
    %v1224 = vld [vmem:[%s4 + $0x2f0] sm:$0xff]
    %v1225 = vld [vmem:[%s4 + $0x2f8] sm:$0xff]
    %v1226 = vld [vmem:[%s4 + $0x300] sm:$0xff]
    %v1227 = vld [vmem:[%s4 + $0x308] sm:$0xff]
    %v1228 = vld [vmem:[%s4 + $0x310] sm:$0xff]
    %v1229 = vld [vmem:[%s4 + $0x318] sm:$0xff]
    %v1230 = vld [vmem:[%s4 + $0x320] sm:$0xff]
    %v1231 = vld [vmem:[%s4 + $0x328] sm:$0xff]
    %v1232 = vld [vmem:[%s4 + $0x330] sm:$0xff]
    %v1233 = vld [vmem:[%s4 + $0x338] sm:$0xff]
    %v1234 = vld [vmem:[%s4 + $0x340] sm:$0xff]
    %v1235 = vld [vmem:[%s4 + $0x348] sm:$0xff]
    %v1236 = vld [vmem:[%s4 + $0x350] sm:$0xff]
    %v1237 = vld [vmem:[%s4 + $0x358] sm:$0xff]
    %v1238 = vld [vmem:[%s4 + $0x360] sm:$0xff]
    %v1239 = vld [vmem:[%s4 + $0x368] sm:$0xff]
    %v1240 = vld [vmem:[%s4 + $0x370] sm:$0xff]
    %v1241 = vld [vmem:[%s4 + $0x378] sm:$0xff]
    %v1242 = vld [vmem:[%s4 + $0x380] sm:$0xff]
    %v1243 = vld [vmem:[%s4 + $0x388] sm:$0xff]
    %v1244 = vld [vmem:[%s4 + $0x390] sm:$0xff]
    %v1245 = vld [vmem:[%s4 + $0x398] sm:$0xff]
    %v1246 = vld [vmem:[%s4 + $0x3a0] sm:$0xff]
    %v1247 = vld [vmem:[%s4 + $0x3a8] sm:$0xff]
    %v1248 = vld [vmem:[%s4 + $0x3b0] sm:$0xff]
    %v1249 = vld [vmem:[%s4 + $0x3b8] sm:$0xff]
    %v1250 = vld [vmem:[%s4 + $0x3c0] sm:$0xff]
    %v1251 = vld [vmem:[%s4 + $0x3c8] sm:$0xff]
    %v1252 = vld [vmem:[%s4 + $0x3d0] sm:$0xff]
    %v1253 = vld [vmem:[%s4 + $0x3d8] sm:$0xff]
    %v1254 = vld [vmem:[%s4 + $0x3e0] sm:$0xff]
    %v1255 = vld [vmem:[%s4 + $0x3e8] sm:$0xff]
    %v1256 = vld [vmem:[%s4 + $0x3f0] sm:$0xff]
    %v1257 = vld [vmem:[%s4 + $0x3f8] sm:$0xff]
    %v1258 = vld [vmem:[%s4 + $0x400] sm:$0xff]
    %v1259 = vld [vmem:[%s4 + $0x408] sm:$0xff]
    %v1260 = vld [vmem:[%s4 + $0x410] sm:$0xff]
    %v1261 = vld [vmem:[%s4 + $0x418] sm:$0xff]
    %v1262 = vld [vmem:[%s4 + $0x420] sm:$0xff]
    %v1263 = vld [vmem:[%s4 + $0x428] sm:$0xff]
    %v1264 = vld [vmem:[%s4 + $0x430] sm:$0xff]
    %v1265 = vld [vmem:[%s4 + $0x438] sm:$0xff]
    %v1266 = vld [vmem:[%s4 + $0x440] sm:$0xff]
    %v1267 = vld [vmem:[%s4 + $0x448] sm:$0xff]
    %v1268 = vld [vmem:[%s4 + $0x450] sm:$0xff]
    %v1269 = vld [vmem:[%s4 + $0x458] sm:$0xff]
    %v1270 = vld [vmem:[%s4 + $0x460] sm:$0xff]
    %v1271 = vld [vmem:[%s4 + $0x468] sm:$0xff]
    %v1272 = vld [vmem:[%s4 + $0x470] sm:$0xff]
    %v1273 = vld [vmem:[%s4 + $0x478] sm:$0xff]
    %v1274 = vld [vmem:[%s4 + $0x480] sm:$0xff]
    %v1275 = vld [vmem:[%s4 + $0x488] sm:$0xff]
    %v1276 = vld [vmem:[%s4 + $0x490] sm:$0xff]
    %v1277 = vld [vmem:[%s4 + $0x498] sm:$0xff]
    %v1278 = vld [vmem:[%s4 + $0x4a0] sm:$0xff]
    %v1279 = vld [vmem:[%s4 + $0x4a8] sm:$0xff]
    %v1280 = vld [vmem:[%s4 + $0x4b0] sm:$0xff]
    %v1281 = vld [vmem:[%s4 + $0x4b8] sm:$0xff]
    %v1282 = vld [vmem:[%s4 + $0x4c0] sm:$0xff]
    %v1283 = vld [vmem:[%s4 + $0x4c8] sm:$0xff]
    %v1284 = vld [vmem:[%s4 + $0x4d0] sm:$0xff]
    %v1285 = vld [vmem:[%s4 + $0x4d8] sm:$0xff]
    %v1286 = vld [vmem:[%s4 + $0x4e0] sm:$0xff]
    %v1287 = vld [vmem:[%s4 + $0x4e8] sm:$0xff]
    %v1288 = vld [vmem:[%s4 + $0x4f0] sm:$0xff]
    %v1289 = vld [vmem:[%s4 + $0x4f8] sm:$0xff]
    %v1290 = vld [vmem:[%s4 + $0x500] sm:$0xff]
    %v1291 = vld [vmem:[%s4 + $0x508] sm:$0xff]
    %v1292 = vld [vmem:[%s4 + $0x510] sm:$0xff]
    %v1293 = vld [vmem:[%s4 + $0x518] sm:$0xff]
    %v1294 = vld [vmem:[%s4 + $0x520] sm:$0xff]
    %v1295 = vld [vmem:[%s4 + $0x528] sm:$0xff]
    %v1296 = vld [vmem:[%s4 + $0x530] sm:$0xff]
    %v1297 = vld [vmem:[%s4 + $0x538] sm:$0xff]
    %v1298 = vld [vmem:[%s4 + $0x540] sm:$0xff]
    %v1299 = vld [vmem:[%s4 + $0x548] sm:$0xff]
    %v1300 = vld [vmem:[%s4 + $0x550] sm:$0xff]
    %v1301 = vld [vmem:[%s4 + $0x558] sm:$0xff]
    %v1302 = vld [vmem:[%s4 + $0x560] sm:$0xff]
    %v1303 = vld [vmem:[%s4 + $0x568] sm:$0xff]
    %v1304 = vld [vmem:[%s4 + $0x570] sm:$0xff]
    %v1305 = vld [vmem:[%s4 + $0x578] sm:$0xff]
    %v1306 = vld [vmem:[%s4 + $0x580] sm:$0xff]
    %v1307 = vld [vmem:[%s4 + $0x588] sm:$0xff]
    %v1308 = vld [vmem:[%s4 + $0x590] sm:$0xff]
    %v1309 = vld [vmem:[%s4 + $0x598] sm:$0xff]
    %v1310 = vld [vmem:[%s4 + $0x5a0] sm:$0xff]
    %v1311 = vld [vmem:[%s4 + $0x5a8] sm:$0xff]
    %v1312 = vld [vmem:[%s4 + $0x5b0] sm:$0xff]
    %v1313 = vld [vmem:[%s4 + $0x5b8] sm:$0xff]
    %v1314 = vld [vmem:[%s4 + $0x5c0] sm:$0xff]
    %v1315 = vld [vmem:[%s4 + $0x5c8] sm:$0xff]
    %v1316 = vld [vmem:[%s4 + $0x5d0] sm:$0xff]
    %v1317 = vld [vmem:[%s4 + $0x5d8] sm:$0xff]
    %v1318 = vld [vmem:[%s4 + $0x5e0] sm:$0xff]
    %v1319 = vld [vmem:[%s4 + $0x5e8] sm:$0xff]
    %v1320 = vld [vmem:[%s4 + $0x5f0] sm:$0xff]
    %v1321 = vld [vmem:[%s4 + $0x5f8] sm:$0xff]
    %v1322 = vld [vmem:[%s5] sm:$0xff]
    %v1323 = vld [vmem:[%s5 + $0x8] sm:$0xff]
    %v1324 = vld [vmem:[%s5 + $0x10] sm:$0xff]
    %v1325 = vld [vmem:[%s5 + $0x18] sm:$0xff]
    %v1326 = vld [vmem:[%s5 + $0x20] sm:$0xff]
    %v1327 = vld [vmem:[%s5 + $0x28] sm:$0xff]
    %v1328 = vld [vmem:[%s5 + $0x30] sm:$0xff]
    %v1329 = vld [vmem:[%s5 + $0x38] sm:$0xff]
    %v1330 = vld [vmem:[%s5 + $0x40] sm:$0xff]
    %v1331 = vld [vmem:[%s5 + $0x48] sm:$0xff]
    %v1332 = vld [vmem:[%s5 + $0x50] sm:$0xff]
    %v1333 = vld [vmem:[%s5 + $0x58] sm:$0xff]
    %v1334 = vld [vmem:[%s5 + $0x60] sm:$0xff]
    %v1335 = vld [vmem:[%s5 + $0x68] sm:$0xff]
    %v1336 = vld [vmem:[%s5 + $0x70] sm:$0xff]
    %v1337 = vld [vmem:[%s5 + $0x78] sm:$0xff]
    %v1338 = vld [vmem:[%s5 + $0x80] sm:$0xff]
    %v1339 = vld [vmem:[%s5 + $0x88] sm:$0xff]
    %v1340 = vld [vmem:[%s5 + $0x90] sm:$0xff]
    %v1341 = vld [vmem:[%s5 + $0x98] sm:$0xff]
    %v1342 = vld [vmem:[%s5 + $0xa0] sm:$0xff]
    %v1343 = vld [vmem:[%s5 + $0xa8] sm:$0xff]
    %v1344 = vld [vmem:[%s5 + $0xb0] sm:$0xff]
    %v1345 = vld [vmem:[%s5 + $0xb8] sm:$0xff]
    %v1346 = vld [vmem:[%s5 + $0xc0] sm:$0xff]
    %v1347 = vld [vmem:[%s5 + $0xc8] sm:$0xff]
    %v1348 = vld [vmem:[%s5 + $0xd0] sm:$0xff]
    %v1349 = vld [vmem:[%s5 + $0xd8] sm:$0xff]
    %v1350 = vld [vmem:[%s5 + $0xe0] sm:$0xff]
    %v1351 = vld [vmem:[%s5 + $0xe8] sm:$0xff]
    %v1352 = vld [vmem:[%s5 + $0xf0] sm:$0xff]
    %v1353 = vld [vmem:[%s5 + $0xf8] sm:$0xff]
    %v1354 = vld [vmem:[%s5 + $0x100] sm:$0xff]
    %v1355 = vld [vmem:[%s5 + $0x108] sm:$0xff]
    %v1356 = vld [vmem:[%s5 + $0x110] sm:$0xff]
    %v1357 = vld [vmem:[%s5 + $0x118] sm:$0xff]
    %v1358 = vld [vmem:[%s5 + $0x120] sm:$0xff]
    %v1359 = vld [vmem:[%s5 + $0x128] sm:$0xff]
    %v1360 = vld [vmem:[%s5 + $0x130] sm:$0xff]
    %v1361 = vld [vmem:[%s5 + $0x138] sm:$0xff]
    %v1362 = vld [vmem:[%s5 + $0x140] sm:$0xff]
    %v1363 = vld [vmem:[%s5 + $0x148] sm:$0xff]
    %v1364 = vld [vmem:[%s5 + $0x150] sm:$0xff]
    %v1365 = vld [vmem:[%s5 + $0x158] sm:$0xff]
    %v1366 = vld [vmem:[%s5 + $0x160] sm:$0xff]
    %v1367 = vld [vmem:[%s5 + $0x168] sm:$0xff]
    %v1368 = vld [vmem:[%s5 + $0x170] sm:$0xff]
    %v1369 = vld [vmem:[%s5 + $0x178] sm:$0xff]
    %v1370 = vld [vmem:[%s1] sm:$0x1]
    %1372 = vset.pattern.permute.xlu0 0
    %1373 = vperm.xlu0 %1372, %v1322
    %v1374 = vpop.permute.xlu0 %1373
    %1377 = vset.pattern.permute.xlu0 0
    %1378 = vperm.xlu0 %1377, %v1323
    %v1379 = vpop.permute.xlu0 %1378
    %1382 = vset.pattern.permute.xlu0 0
    %1383 = vperm.xlu0 %1382, %v1324
    %v1384 = vpop.permute.xlu0 %1383
    %1387 = vset.pattern.permute.xlu0 0
    %1388 = vperm.xlu0 %1387, %v1325
    %v1389 = vpop.permute.xlu0 %1388
    %1392 = vset.pattern.permute.xlu0 0
    %1393 = vperm.xlu0 %1392, %v1326
    %v1394 = vpop.permute.xlu0 %1393
    %1397 = vset.pattern.permute.xlu0 0
    %1398 = vperm.xlu0 %1397, %v1327
    %v1399 = vpop.permute.xlu0 %1398
    %1402 = vset.pattern.permute.xlu0 0
    %1403 = vperm.xlu0 %1402, %v1328
    %v1404 = vpop.permute.xlu0 %1403
    %1407 = vset.pattern.permute.xlu0 0
    %1408 = vperm.xlu0 %1407, %v1329
    %v1409 = vpop.permute.xlu0 %1408
    %1412 = vset.pattern.permute.xlu0 0
    %1413 = vperm.xlu0 %1412, %v1330
    %v1414 = vpop.permute.xlu0 %1413
    %1417 = vset.pattern.permute.xlu0 0
    %1418 = vperm.xlu0 %1417, %v1331
    %v1419 = vpop.permute.xlu0 %1418
    %1422 = vset.pattern.permute.xlu0 0
    %1423 = vperm.xlu0 %1422, %v1332
    %v1424 = vpop.permute.xlu0 %1423
    %1427 = vset.pattern.permute.xlu0 0
    %1428 = vperm.xlu0 %1427, %v1333
    %v1429 = vpop.permute.xlu0 %1428
    %1432 = vset.pattern.permute.xlu0 0
    %1433 = vperm.xlu0 %1432, %v1334
    %v1434 = vpop.permute.xlu0 %1433
    %1437 = vset.pattern.permute.xlu0 0
    %1438 = vperm.xlu0 %1437, %v1335
    %v1439 = vpop.permute.xlu0 %1438
    %1442 = vset.pattern.permute.xlu0 0
    %1443 = vperm.xlu0 %1442, %v1336
    %v1444 = vpop.permute.xlu0 %1443
    %1447 = vset.pattern.permute.xlu0 0
    %1448 = vperm.xlu0 %1447, %v1337
    %v1449 = vpop.permute.xlu0 %1448
    %1452 = vset.pattern.permute.xlu0 0
    %1453 = vperm.xlu0 %1452, %v1338
    %v1454 = vpop.permute.xlu0 %1453
    %1457 = vset.pattern.permute.xlu0 0
    %1458 = vperm.xlu0 %1457, %v1339
    %v1459 = vpop.permute.xlu0 %1458
    %1462 = vset.pattern.permute.xlu0 0
    %1463 = vperm.xlu0 %1462, %v1340
    %v1464 = vpop.permute.xlu0 %1463
    %1467 = vset.pattern.permute.xlu0 0
    %1468 = vperm.xlu0 %1467, %v1341
    %v1469 = vpop.permute.xlu0 %1468
    %1472 = vset.pattern.permute.xlu0 0
    %1473 = vperm.xlu0 %1472, %v1342
    %v1474 = vpop.permute.xlu0 %1473
    %1477 = vset.pattern.permute.xlu0 0
    %1478 = vperm.xlu0 %1477, %v1343
    %v1479 = vpop.permute.xlu0 %1478
    %1482 = vset.pattern.permute.xlu0 0
    %1483 = vperm.xlu0 %1482, %v1344
    %v1484 = vpop.permute.xlu0 %1483
    %1487 = vset.pattern.permute.xlu0 0
    %1488 = vperm.xlu0 %1487, %v1345
    %v1489 = vpop.permute.xlu0 %1488
    %1492 = vset.pattern.permute.xlu0 0
    %1493 = vperm.xlu0 %1492, %v1346
    %v1494 = vpop.permute.xlu0 %1493
    %1497 = vset.pattern.permute.xlu0 0
    %1498 = vperm.xlu0 %1497, %v1347
    %v1499 = vpop.permute.xlu0 %1498
    %1502 = vset.pattern.permute.xlu0 0
    %1503 = vperm.xlu0 %1502, %v1348
    %v1504 = vpop.permute.xlu0 %1503
    %1507 = vset.pattern.permute.xlu0 0
    %1508 = vperm.xlu0 %1507, %v1349
    %v1509 = vpop.permute.xlu0 %1508
    %1512 = vset.pattern.permute.xlu0 0
    %1513 = vperm.xlu0 %1512, %v1350
    %v1514 = vpop.permute.xlu0 %1513
    %1517 = vset.pattern.permute.xlu0 0
    %1518 = vperm.xlu0 %1517, %v1351
    %v1519 = vpop.permute.xlu0 %1518
    %1522 = vset.pattern.permute.xlu0 0
    %1523 = vperm.xlu0 %1522, %v1352
    %v1524 = vpop.permute.xlu0 %1523
    %1527 = vset.pattern.permute.xlu0 0
    %1528 = vperm.xlu0 %1527, %v1353
    %v1529 = vpop.permute.xlu0 %1528
    %1532 = vset.pattern.permute.xlu0 0
    %1533 = vperm.xlu0 %1532, %v1354
    %v1534 = vpop.permute.xlu0 %1533
    %1537 = vset.pattern.permute.xlu0 0
    %1538 = vperm.xlu0 %1537, %v1355
    %v1539 = vpop.permute.xlu0 %1538
    %1542 = vset.pattern.permute.xlu0 0
    %1543 = vperm.xlu0 %1542, %v1356
    %v1544 = vpop.permute.xlu0 %1543
    %1547 = vset.pattern.permute.xlu0 0
    %1548 = vperm.xlu0 %1547, %v1357
    %v1549 = vpop.permute.xlu0 %1548
    %1552 = vset.pattern.permute.xlu0 0
    %1553 = vperm.xlu0 %1552, %v1358
    %v1554 = vpop.permute.xlu0 %1553
    %1557 = vset.pattern.permute.xlu0 0
    %1558 = vperm.xlu0 %1557, %v1359
    %v1559 = vpop.permute.xlu0 %1558
    %1562 = vset.pattern.permute.xlu0 0
    %1563 = vperm.xlu0 %1562, %v1360
    %v1564 = vpop.permute.xlu0 %1563
    %1567 = vset.pattern.permute.xlu0 0
    %1568 = vperm.xlu0 %1567, %v1361
    %v1569 = vpop.permute.xlu0 %1568
    %1572 = vset.pattern.permute.xlu0 0
    %1573 = vperm.xlu0 %1572, %v1362
    %v1574 = vpop.permute.xlu0 %1573
    %1577 = vset.pattern.permute.xlu0 0
    %1578 = vperm.xlu0 %1577, %v1363
    %v1579 = vpop.permute.xlu0 %1578
    %1582 = vset.pattern.permute.xlu0 0
    %1583 = vperm.xlu0 %1582, %v1364
    %v1584 = vpop.permute.xlu0 %1583
    %1587 = vset.pattern.permute.xlu0 0
    %1588 = vperm.xlu0 %1587, %v1365
    %v1589 = vpop.permute.xlu0 %1588
    %1592 = vset.pattern.permute.xlu0 0
    %1593 = vperm.xlu0 %1592, %v1366
    %v1594 = vpop.permute.xlu0 %1593
    %1597 = vset.pattern.permute.xlu0 0
    %1598 = vperm.xlu0 %1597, %v1367
    %v1599 = vpop.permute.xlu0 %1598
    %1602 = vset.pattern.permute.xlu0 0
    %1603 = vperm.xlu0 %1602, %v1368
    %v1604 = vpop.permute.xlu0 %1603
    %1607 = vset.pattern.permute.xlu0 0
    %1608 = vperm.xlu0 %1607, %v1369
    %v1609 = vpop.permute.xlu0 %1608
    %v1612 = vlaneseq
    %v1613 = vshrl.u32 %v1612, 7
    %v1614 = vsub.s32 0, %v1613
    %v1615 = vrot.slane %v1370, %v1614
    %v1617 = vmul.f32 %v1374, %v1615
    %v1618 = vmul.f32 %v1379, %v1615
    %v1619 = vmul.f32 %v1384, %v1615
    %v1620 = vmul.f32 %v1389, %v1615
    %v1621 = vmul.f32 %v1394, %v1615
    %v1622 = vmul.f32 %v1399, %v1615
    %v1623 = vmul.f32 %v1404, %v1615
    %v1624 = vmul.f32 %v1409, %v1615
    %v1625 = vmul.f32 %v1414, %v1615
    %v1626 = vmul.f32 %v1419, %v1615
    %v1627 = vmul.f32 %v1424, %v1615
    %v1628 = vmul.f32 %v1429, %v1615
    %v1629 = vmul.f32 %v1434, %v1615
    %v1630 = vmul.f32 %v1439, %v1615
    %v1631 = vmul.f32 %v1444, %v1615
    %v1632 = vmul.f32 %v1449, %v1615
    %v1633 = vmul.f32 %v1454, %v1615
    %v1634 = vmul.f32 %v1459, %v1615
    %v1635 = vmul.f32 %v1464, %v1615
    %v1636 = vmul.f32 %v1469, %v1615
    %v1637 = vmul.f32 %v1474, %v1615
    %v1638 = vmul.f32 %v1479, %v1615
    %v1639 = vmul.f32 %v1484, %v1615
    %v1640 = vmul.f32 %v1489, %v1615
    %v1641 = vmul.f32 %v1494, %v1615
    %v1642 = vmul.f32 %v1499, %v1615
    %v1643 = vmul.f32 %v1504, %v1615
    %v1644 = vmul.f32 %v1509, %v1615
    %v1645 = vmul.f32 %v1514, %v1615
    %v1646 = vmul.f32 %v1519, %v1615
    %v1647 = vmul.f32 %v1524, %v1615
    %v1648 = vmul.f32 %v1529, %v1615
    %v1649 = vmul.f32 %v1534, %v1615
    %v1650 = vmul.f32 %v1539, %v1615
    %v1651 = vmul.f32 %v1544, %v1615
    %v1652 = vmul.f32 %v1549, %v1615
    %v1653 = vmul.f32 %v1554, %v1615
    %v1654 = vmul.f32 %v1559, %v1615
    %v1655 = vmul.f32 %v1564, %v1615
    %v1656 = vmul.f32 %v1569, %v1615
    %v1657 = vmul.f32 %v1574, %v1615
    %v1658 = vmul.f32 %v1579, %v1615
    %v1659 = vmul.f32 %v1584, %v1615
    %v1660 = vmul.f32 %v1589, %v1615
    %v1661 = vmul.f32 %v1594, %v1615
    %v1662 = vmul.f32 %v1599, %v1615
    %v1663 = vmul.f32 %v1604, %v1615
    %v1664 = vmul.f32 %v1609, %v1615
    %1665 = vmatprep.subr.mxu0 0.0
    %1666 = vmatpush1.msra.mxu0 %v1081
    %1667 = vmatprep.subr.mxu0 0.0
    %1668 = vmatpush1.msra.mxu0 %v1080
    %1669 = vmatprep.subr.mxu0 0.0
    %1670 = vmatpush1.msra.mxu0 %v1079
    %1671 = vmatprep.subr.mxu0 0.0
    %1672 = vmatpush1.msra.mxu0 %v1078
    %1673 = vmatprep.subr.mxu0 0.0
    %1674 = vmatpush1.msra.mxu0 %v1077
    %1675 = vmatprep.subr.mxu0 0.0
    %1676 = vmatpush1.msra.mxu0 %v1076
    %1677 = vmatprep.subr.mxu0 0.0
    %1678 = vmatpush1.msra.mxu0 %v1075
    %1679 = vmatprep.subr.mxu0 0.0
    %1680 = vmatpush1.msra.mxu0 %v1074
    %1681 = vmatprep.subr.mxu0 0.0
    %1682 = vmatpush1.msra.mxu0 %v1073
    %1683 = vmatprep.subr.mxu0 0.0
    %1684 = vmatpush1.msra.mxu0 %v1072
    %1685 = vmatprep.subr.mxu0 0.0
    %1686 = vmatpush1.msra.mxu0 %v1071
    %1687 = vmatprep.subr.mxu0 0.0
    %1688 = vmatpush1.msra.mxu0 %v1070
    %1689 = vmatprep.subr.mxu0 0.0
    %1690 = vmatpush1.msra.mxu0 %v1069
    %1691 = vmatprep.subr.mxu0 0.0
    %1692 = vmatpush1.msra.mxu0 %v1068
    %1693 = vmatprep.subr.mxu0 0.0
    %1694 = vmatpush1.msra.mxu0 %v1067
    %1695 = vmatprep.subr.mxu0 0.0
    %1696 = vmatpush1.msra.mxu0 %v1066
    %1697 = vmatprep.subr.mxu0 0.0
    %1698 = vmatpush2.msra.mxu0 %v1097
    %1699 = vmatprep.subr.mxu0 0.0
    %1700 = vmatpush2.msra.mxu0 %v1096
    %1701 = vmatprep.subr.mxu0 0.0
    %1702 = vmatpush2.msra.mxu0 %v1095
    %1703 = vmatprep.subr.mxu0 0.0
    %1704 = vmatpush2.msra.mxu0 %v1094
    %1705 = vmatprep.subr.mxu0 0.0
    %1706 = vmatpush2.msra.mxu0 %v1093
    %1707 = vmatprep.subr.mxu0 0.0
    %1708 = vmatpush2.msra.mxu0 %v1092
    %1709 = vmatprep.subr.mxu0 0.0
    %1710 = vmatpush2.msra.mxu0 %v1091
    %1711 = vmatprep.subr.mxu0 0.0
    %1712 = vmatpush2.msra.mxu0 %v1090
    %1713 = vmatprep.subr.mxu0 0.0
    %1714 = vmatpush2.msra.mxu0 %v1089
    %1715 = vmatprep.subr.mxu0 0.0
    %1716 = vmatpush2.msra.mxu0 %v1088
    %1717 = vmatprep.subr.mxu0 0.0
    %1718 = vmatpush2.msra.mxu0 %v1087
    %1719 = vmatprep.subr.mxu0 0.0
    %1720 = vmatpush2.msra.mxu0 %v1086
    %1721 = vmatprep.subr.mxu0 0.0
    %1722 = vmatpush2.msra.mxu0 %v1085
    %1723 = vmatprep.subr.mxu0 0.0
    %1724 = vmatpush2.msra.mxu0 %v1084
    %1725 = vmatprep.subr.mxu0 0.0
    %1726 = vmatpush2.msra.mxu0 %v1083
    %1727 = vmatprep.subr.mxu0 0.0
    %1728 = vmatpush2.msra.mxu0 %v1082
    %1729 = vmatprep.mubr.f32.mxu0 %v1131
    %1730 = vmatmul.mubr.f32.gmra.mxu0 %v1130
    %v1731 = vpop.f32.mrf.mxu0
    %v1732 = vadd.f32 %v1617, %v1731
    %v1733 = vpop.f32.mrf.mxu0
    %1734 = vmatprep.mubr.f32.mxu0 %v1135
    %1735 = vmatmul.mubr.f32.gmra.mxu0 %v1134
    %v1736 = vpop.f32.mrf.mxu0
    %v1737 = vadd.f32 %v1618, %v1736
    %v1738 = vpop.f32.mrf.mxu0
    %1739 = vmatprep.mubr.f32.mxu0 %v1139
    %1740 = vmatmul.mubr.f32.gmra.mxu0 %v1138
    %v1741 = vpop.f32.mrf.mxu0
    %v1742 = vadd.f32 %v1619, %v1741
    %v1743 = vpop.f32.mrf.mxu0
    %1744 = vmatprep.mubr.f32.mxu0 %v1143
    %1745 = vmatmul.mubr.f32.gmra.mxu0 %v1142
    %v1746 = vpop.f32.mrf.mxu0
    %v1747 = vadd.f32 %v1620, %v1746
    %v1748 = vpop.f32.mrf.mxu0
    %1749 = vmatprep.mubr.f32.mxu0 %v1147
    %1750 = vmatmul.mubr.f32.gmra.mxu0 %v1146
    %v1751 = vpop.f32.mrf.mxu0
    %v1752 = vadd.f32 %v1621, %v1751
    %v1753 = vpop.f32.mrf.mxu0
    %1754 = vmatprep.mubr.f32.mxu0 %v1151
    %1755 = vmatmul.mubr.f32.gmra.mxu0 %v1150
    %v1756 = vpop.f32.mrf.mxu0
    %v1757 = vadd.f32 %v1622, %v1756
    %v1758 = vpop.f32.mrf.mxu0
    %1759 = vmatprep.mubr.f32.mxu0 %v1155
    %1760 = vmatmul.mubr.f32.gmra.mxu0 %v1154
    %v1761 = vpop.f32.mrf.mxu0
    %v1762 = vadd.f32 %v1623, %v1761
    %v1763 = vpop.f32.mrf.mxu0
    %1764 = vmatprep.mubr.f32.mxu0 %v1159
    %1765 = vmatmul.mubr.f32.gmra.mxu0 %v1158
    %v1766 = vpop.f32.mrf.mxu0
    %v1767 = vadd.f32 %v1624, %v1766
    %v1768 = vpop.f32.mrf.mxu0
    %1769 = vmatprep.mubr.f32.mxu0 %v1163
    %1770 = vmatmul.mubr.f32.gmra.mxu0 %v1162
    %v1771 = vpop.f32.mrf.mxu0
    %v1772 = vadd.f32 %v1625, %v1771
    %v1773 = vpop.f32.mrf.mxu0
    %1774 = vmatprep.mubr.f32.mxu0 %v1167
    %1775 = vmatmul.mubr.f32.gmra.mxu0 %v1166
    %v1776 = vpop.f32.mrf.mxu0
    %v1777 = vadd.f32 %v1626, %v1776
    %v1778 = vpop.f32.mrf.mxu0
    %1779 = vmatprep.mubr.f32.mxu0 %v1171
    %1780 = vmatmul.mubr.f32.gmra.mxu0 %v1170
    %v1781 = vpop.f32.mrf.mxu0
    %v1782 = vadd.f32 %v1627, %v1781
    %v1783 = vpop.f32.mrf.mxu0
    %1784 = vmatprep.mubr.f32.mxu0 %v1175
    %1785 = vmatmul.mubr.f32.gmra.mxu0 %v1174
    %v1786 = vpop.f32.mrf.mxu0
    %v1787 = vadd.f32 %v1628, %v1786
    %v1788 = vpop.f32.mrf.mxu0
    %1789 = vmatprep.mubr.f32.mxu0 %v1179
    %1790 = vmatmul.mubr.f32.gmra.mxu0 %v1178
    %v1791 = vpop.f32.mrf.mxu0
    %v1792 = vadd.f32 %v1629, %v1791
    %v1793 = vpop.f32.mrf.mxu0
    %1794 = vmatprep.mubr.f32.mxu0 %v1183
    %1795 = vmatmul.mubr.f32.gmra.mxu0 %v1182
    %v1796 = vpop.f32.mrf.mxu0
    %v1797 = vadd.f32 %v1630, %v1796
    %v1798 = vpop.f32.mrf.mxu0
    %1799 = vmatprep.mubr.f32.mxu0 %v1187
    %1800 = vmatmul.mubr.f32.gmra.mxu0 %v1186
    %v1801 = vpop.f32.mrf.mxu0
    %v1802 = vadd.f32 %v1631, %v1801
    %v1803 = vpop.f32.mrf.mxu0
    %1804 = vmatprep.mubr.f32.mxu0 %v1191
    %1805 = vmatmul.mubr.f32.gmra.mxu0 %v1190
    %v1806 = vpop.f32.mrf.mxu0
    %v1807 = vadd.f32 %v1632, %v1806
    %v1808 = vpop.f32.mrf.mxu0
    %1809 = vmatprep.mubr.f32.mxu0 %v1195
    %1810 = vmatmul.mubr.f32.gmra.mxu0 %v1194
    %v1811 = vpop.f32.mrf.mxu0
    %v1812 = vadd.f32 %v1633, %v1811
    %v1813 = vpop.f32.mrf.mxu0
    %1814 = vmatprep.mubr.f32.mxu0 %v1199
    %1815 = vmatmul.mubr.f32.gmra.mxu0 %v1198
    %v1816 = vpop.f32.mrf.mxu0
    %v1817 = vadd.f32 %v1634, %v1816
    %v1818 = vpop.f32.mrf.mxu0
    %1819 = vmatprep.mubr.f32.mxu0 %v1203
    %1820 = vmatmul.mubr.f32.gmra.mxu0 %v1202
    %v1821 = vpop.f32.mrf.mxu0
    %v1822 = vadd.f32 %v1635, %v1821
    %v1823 = vpop.f32.mrf.mxu0
    %1824 = vmatprep.mubr.f32.mxu0 %v1207
    %1825 = vmatmul.mubr.f32.gmra.mxu0 %v1206
    %v1826 = vpop.f32.mrf.mxu0
    %v1827 = vadd.f32 %v1636, %v1826
    %v1828 = vpop.f32.mrf.mxu0
    %1829 = vmatprep.mubr.f32.mxu0 %v1211
    %1830 = vmatmul.mubr.f32.gmra.mxu0 %v1210
    %v1831 = vpop.f32.mrf.mxu0
    %v1832 = vadd.f32 %v1637, %v1831
    %v1833 = vpop.f32.mrf.mxu0
    %1834 = vmatprep.mubr.f32.mxu0 %v1215
    %1835 = vmatmul.mubr.f32.gmra.mxu0 %v1214
    %v1836 = vpop.f32.mrf.mxu0
    %v1837 = vadd.f32 %v1638, %v1836
    %v1838 = vpop.f32.mrf.mxu0
    %1839 = vmatprep.mubr.f32.mxu0 %v1219
    %1840 = vmatmul.mubr.f32.gmra.mxu0 %v1218
    %v1841 = vpop.f32.mrf.mxu0
    %v1842 = vadd.f32 %v1639, %v1841
    %v1843 = vpop.f32.mrf.mxu0
    %1844 = vmatprep.mubr.f32.mxu0 %v1223
    %1845 = vmatmul.mubr.f32.gmra.mxu0 %v1222
    %v1846 = vpop.f32.mrf.mxu0
    %v1847 = vadd.f32 %v1640, %v1846
    %v1848 = vpop.f32.mrf.mxu0
    %1849 = vmatprep.mubr.f32.mxu0 %v1227
    %1850 = vmatmul.mubr.f32.gmra.mxu0 %v1226
    %v1851 = vpop.f32.mrf.mxu0
    %v1852 = vadd.f32 %v1641, %v1851
    %v1853 = vpop.f32.mrf.mxu0
    %1854 = vmatprep.mubr.f32.mxu0 %v1231
    %1855 = vmatmul.mubr.f32.gmra.mxu0 %v1230
    %v1856 = vpop.f32.mrf.mxu0
    %v1857 = vadd.f32 %v1642, %v1856
    %v1858 = vpop.f32.mrf.mxu0
    %1859 = vmatprep.mubr.f32.mxu0 %v1235
    %1860 = vmatmul.mubr.f32.gmra.mxu0 %v1234
    %v1861 = vpop.f32.mrf.mxu0
    %v1862 = vadd.f32 %v1643, %v1861
    %v1863 = vpop.f32.mrf.mxu0
    %1864 = vmatprep.mubr.f32.mxu0 %v1239
    %1865 = vmatmul.mubr.f32.gmra.mxu0 %v1238
    %v1866 = vpop.f32.mrf.mxu0
    %v1867 = vadd.f32 %v1644, %v1866
    %v1868 = vpop.f32.mrf.mxu0
    %1869 = vmatprep.mubr.f32.mxu0 %v1243
    %1870 = vmatmul.mubr.f32.gmra.mxu0 %v1242
    %v1871 = vpop.f32.mrf.mxu0
    %v1872 = vadd.f32 %v1645, %v1871
    %v1873 = vpop.f32.mrf.mxu0
    %1874 = vmatprep.mubr.f32.mxu0 %v1247
    %1875 = vmatmul.mubr.f32.gmra.mxu0 %v1246
    %v1876 = vpop.f32.mrf.mxu0
    %v1877 = vadd.f32 %v1646, %v1876
    %v1878 = vpop.f32.mrf.mxu0
    %1879 = vmatprep.mubr.f32.mxu0 %v1251
    %1880 = vmatmul.mubr.f32.gmra.mxu0 %v1250
    %v1881 = vpop.f32.mrf.mxu0
    %v1882 = vadd.f32 %v1647, %v1881
    %v1883 = vpop.f32.mrf.mxu0
    %1884 = vmatprep.mubr.f32.mxu0 %v1255
    %1885 = vmatmul.mubr.f32.gmra.mxu0 %v1254
    %v1886 = vpop.f32.mrf.mxu0
    %v1887 = vadd.f32 %v1648, %v1886
    %v1888 = vpop.f32.mrf.mxu0
    %1889 = vmatprep.mubr.f32.mxu0 %v1259
    %1890 = vmatmul.mubr.f32.gmra.mxu0 %v1258
    %v1891 = vpop.f32.mrf.mxu0
    %v1892 = vadd.f32 %v1649, %v1891
    %v1893 = vpop.f32.mrf.mxu0
    %1894 = vmatprep.mubr.f32.mxu0 %v1263
    %1895 = vmatmul.mubr.f32.gmra.mxu0 %v1262
    %v1896 = vpop.f32.mrf.mxu0
    %v1897 = vadd.f32 %v1650, %v1896
    %v1898 = vpop.f32.mrf.mxu0
    %1899 = vmatprep.mubr.f32.mxu0 %v1267
    %1900 = vmatmul.mubr.f32.gmra.mxu0 %v1266
    %v1901 = vpop.f32.mrf.mxu0
    %v1902 = vadd.f32 %v1651, %v1901
    %v1903 = vpop.f32.mrf.mxu0
    %1904 = vmatprep.mubr.f32.mxu0 %v1271
    %1905 = vmatmul.mubr.f32.gmra.mxu0 %v1270
    %v1906 = vpop.f32.mrf.mxu0
    %v1907 = vadd.f32 %v1652, %v1906
    %v1908 = vpop.f32.mrf.mxu0
    %1909 = vmatprep.mubr.f32.mxu0 %v1275
    %1910 = vmatmul.mubr.f32.gmra.mxu0 %v1274
    %v1911 = vpop.f32.mrf.mxu0
    %v1912 = vadd.f32 %v1653, %v1911
    %v1913 = vpop.f32.mrf.mxu0
    %1914 = vmatprep.mubr.f32.mxu0 %v1279
    %1915 = vmatmul.mubr.f32.gmra.mxu0 %v1278
    %v1916 = vpop.f32.mrf.mxu0
    %v1917 = vadd.f32 %v1654, %v1916
    %v1918 = vpop.f32.mrf.mxu0
    %1919 = vmatprep.mubr.f32.mxu0 %v1283
    %1920 = vmatmul.mubr.f32.gmra.mxu0 %v1282
    %v1921 = vpop.f32.mrf.mxu0
    %v1922 = vadd.f32 %v1655, %v1921
    %v1923 = vpop.f32.mrf.mxu0
    %1924 = vmatprep.mubr.f32.mxu0 %v1287
    %1925 = vmatmul.mubr.f32.gmra.mxu0 %v1286
    %v1926 = vpop.f32.mrf.mxu0
    %v1927 = vadd.f32 %v1656, %v1926
    %v1928 = vpop.f32.mrf.mxu0
    %1929 = vmatprep.mubr.f32.mxu0 %v1291
    %1930 = vmatmul.mubr.f32.gmra.mxu0 %v1290
    %v1931 = vpop.f32.mrf.mxu0
    %v1932 = vadd.f32 %v1657, %v1931
    %v1933 = vpop.f32.mrf.mxu0
    %1934 = vmatprep.mubr.f32.mxu0 %v1295
    %1935 = vmatmul.mubr.f32.gmra.mxu0 %v1294
    %v1936 = vpop.f32.mrf.mxu0
    %v1937 = vadd.f32 %v1658, %v1936
    %v1938 = vpop.f32.mrf.mxu0
    %1939 = vmatprep.mubr.f32.mxu0 %v1299
    %1940 = vmatmul.mubr.f32.gmra.mxu0 %v1298
    %v1941 = vpop.f32.mrf.mxu0
    %v1942 = vadd.f32 %v1659, %v1941
    %v1943 = vpop.f32.mrf.mxu0
    %1944 = vmatprep.mubr.f32.mxu0 %v1303
    %1945 = vmatmul.mubr.f32.gmra.mxu0 %v1302
    %v1946 = vpop.f32.mrf.mxu0
    %v1947 = vadd.f32 %v1660, %v1946
    %v1948 = vpop.f32.mrf.mxu0
    %1949 = vmatprep.mubr.f32.mxu0 %v1307
    %1950 = vmatmul.mubr.f32.gmra.mxu0 %v1306
    %v1951 = vpop.f32.mrf.mxu0
    %v1952 = vadd.f32 %v1661, %v1951
    %v1953 = vpop.f32.mrf.mxu0
    %1954 = vmatprep.mubr.f32.mxu0 %v1311
    %1955 = vmatmul.mubr.f32.gmra.mxu0 %v1310
    %v1956 = vpop.f32.mrf.mxu0
    %v1957 = vadd.f32 %v1662, %v1956
    %v1958 = vpop.f32.mrf.mxu0
    %1959 = vmatprep.mubr.f32.mxu0 %v1315
    %1960 = vmatmul.mubr.f32.gmra.mxu0 %v1314
    %v1961 = vpop.f32.mrf.mxu0
    %v1962 = vadd.f32 %v1663, %v1961
    %v1963 = vpop.f32.mrf.mxu0
    %1964 = vmatprep.mubr.f32.mxu0 %v1319
    %1965 = vmatmul.mubr.f32.gmra.mxu0 %v1318
    %v1966 = vpop.f32.mrf.mxu0
    %v1967 = vadd.f32 %v1664, %v1966
    %v1968 = vpop.f32.mrf.mxu0
    %1969 = vdwg.mxu0
    %1970 = vmatprep.subr.mxu0 0.0
    %1971 = vmatpush1.msra.mxu0 %v1113
    %1972 = vmatprep.subr.mxu0 0.0
    %1973 = vmatpush1.msra.mxu0 %v1112
    %1974 = vmatprep.subr.mxu0 0.0
    %1975 = vmatpush1.msra.mxu0 %v1111
    %1976 = vmatprep.subr.mxu0 0.0
    %1977 = vmatpush1.msra.mxu0 %v1110
    %1978 = vmatprep.subr.mxu0 0.0
    %1979 = vmatpush1.msra.mxu0 %v1109
    %1980 = vmatprep.subr.mxu0 0.0
    %1981 = vmatpush1.msra.mxu0 %v1108
    %1982 = vmatprep.subr.mxu0 0.0
    %1983 = vmatpush1.msra.mxu0 %v1107
    %1984 = vmatprep.subr.mxu0 0.0
    %1985 = vmatpush1.msra.mxu0 %v1106
    %1986 = vmatprep.subr.mxu0 0.0
    %1987 = vmatpush1.msra.mxu0 %v1105
    %1988 = vmatprep.subr.mxu0 0.0
    %1989 = vmatpush1.msra.mxu0 %v1104
    %1990 = vmatprep.subr.mxu0 0.0
    %1991 = vmatpush1.msra.mxu0 %v1103
    %1992 = vmatprep.subr.mxu0 0.0
    %1993 = vmatpush1.msra.mxu0 %v1102
    %1994 = vmatprep.subr.mxu0 0.0
    %1995 = vmatpush1.msra.mxu0 %v1101
    %1996 = vmatprep.subr.mxu0 0.0
    %1997 = vmatpush1.msra.mxu0 %v1100
    %1998 = vmatprep.subr.mxu0 0.0
    %1999 = vmatpush1.msra.mxu0 %v1099
    %2000 = vmatprep.subr.mxu0 0.0
    %2001 = vmatpush1.msra.mxu0 %v1098
    %2002 = vmatprep.subr.mxu0 0.0
    %2003 = vmatpush2.msra.mxu0 %v1129
    %2004 = vmatprep.subr.mxu0 0.0
    %2005 = vmatpush2.msra.mxu0 %v1128
    %2006 = vmatprep.subr.mxu0 0.0
    %2007 = vmatpush2.msra.mxu0 %v1127
    %2008 = vmatprep.subr.mxu0 0.0
    %2009 = vmatpush2.msra.mxu0 %v1126
    %2010 = vmatprep.subr.mxu0 0.0
    %2011 = vmatpush2.msra.mxu0 %v1125
    %2012 = vmatprep.subr.mxu0 0.0
    %2013 = vmatpush2.msra.mxu0 %v1124
    %2014 = vmatprep.subr.mxu0 0.0
    %2015 = vmatpush2.msra.mxu0 %v1123
    %2016 = vmatprep.subr.mxu0 0.0
    %2017 = vmatpush2.msra.mxu0 %v1122
    %2018 = vmatprep.subr.mxu0 0.0
    %2019 = vmatpush2.msra.mxu0 %v1121
    %2020 = vmatprep.subr.mxu0 0.0
    %2021 = vmatpush2.msra.mxu0 %v1120
    %2022 = vmatprep.subr.mxu0 0.0
    %2023 = vmatpush2.msra.mxu0 %v1119
    %2024 = vmatprep.subr.mxu0 0.0
    %2025 = vmatpush2.msra.mxu0 %v1118
    %2026 = vmatprep.subr.mxu0 0.0
    %2027 = vmatpush2.msra.mxu0 %v1117
    %2028 = vmatprep.subr.mxu0 0.0
    %2029 = vmatpush2.msra.mxu0 %v1116
    %2030 = vmatprep.subr.mxu0 0.0
    %2031 = vmatpush2.msra.mxu0 %v1115
    %2032 = vmatprep.subr.mxu0 0.0
    %2033 = vmatpush2.msra.mxu0 %v1114
    %2034 = vmatprep.mubr.f32.mxu0 %v1133
    %2035 = vmatmul.mubr.f32.gmra.mxu0 %v1132
    %v2036 = vpop.f32.mrf.mxu0
    %v2037 = vadd.f32 %v1732, %v2036
    %v2038 = vpop.f32.mrf.mxu0
    %2039 = vmatprep.mubr.f32.mxu0 %v1137
    %2040 = vmatmul.mubr.f32.gmra.mxu0 %v1136
    %v2041 = vpop.f32.mrf.mxu0
    %v2042 = vadd.f32 %v1737, %v2041
    %v2043 = vpop.f32.mrf.mxu0
    %2044 = vmatprep.mubr.f32.mxu0 %v1141
    %2045 = vmatmul.mubr.f32.gmra.mxu0 %v1140
    %v2046 = vpop.f32.mrf.mxu0
    %v2047 = vadd.f32 %v1742, %v2046
    %v2048 = vpop.f32.mrf.mxu0
    %2049 = vmatprep.mubr.f32.mxu0 %v1145
    %2050 = vmatmul.mubr.f32.gmra.mxu0 %v1144
    %v2051 = vpop.f32.mrf.mxu0
    %v2052 = vadd.f32 %v1747, %v2051
    %v2053 = vpop.f32.mrf.mxu0
    %2054 = vmatprep.mubr.f32.mxu0 %v1149
    %2055 = vmatmul.mubr.f32.gmra.mxu0 %v1148
    %v2056 = vpop.f32.mrf.mxu0
    %v2057 = vadd.f32 %v1752, %v2056
    %v2058 = vpop.f32.mrf.mxu0
    %2059 = vmatprep.mubr.f32.mxu0 %v1153
    %2060 = vmatmul.mubr.f32.gmra.mxu0 %v1152
    %v2061 = vpop.f32.mrf.mxu0
    %v2062 = vadd.f32 %v1757, %v2061
    %v2063 = vpop.f32.mrf.mxu0
    %2064 = vmatprep.mubr.f32.mxu0 %v1157
    %2065 = vmatmul.mubr.f32.gmra.mxu0 %v1156
    %v2066 = vpop.f32.mrf.mxu0
    %v2067 = vadd.f32 %v1762, %v2066
    %v2068 = vpop.f32.mrf.mxu0
    %2069 = vmatprep.mubr.f32.mxu0 %v1161
    %2070 = vmatmul.mubr.f32.gmra.mxu0 %v1160
    %v2071 = vpop.f32.mrf.mxu0
    %v2072 = vadd.f32 %v1767, %v2071
    %v2073 = vpop.f32.mrf.mxu0
    %2074 = vmatprep.mubr.f32.mxu0 %v1165
    %2075 = vmatmul.mubr.f32.gmra.mxu0 %v1164
    %v2076 = vpop.f32.mrf.mxu0
    %v2077 = vadd.f32 %v1772, %v2076
    %v2078 = vpop.f32.mrf.mxu0
    %2079 = vmatprep.mubr.f32.mxu0 %v1169
    %2080 = vmatmul.mubr.f32.gmra.mxu0 %v1168
    %v2081 = vpop.f32.mrf.mxu0
    %v2082 = vadd.f32 %v1777, %v2081
    %v2083 = vpop.f32.mrf.mxu0
    %2084 = vmatprep.mubr.f32.mxu0 %v1173
    %2085 = vmatmul.mubr.f32.gmra.mxu0 %v1172
    %v2086 = vpop.f32.mrf.mxu0
    %v2087 = vadd.f32 %v1782, %v2086
    %v2088 = vpop.f32.mrf.mxu0
    %2089 = vmatprep.mubr.f32.mxu0 %v1177
    %2090 = vmatmul.mubr.f32.gmra.mxu0 %v1176
    %v2091 = vpop.f32.mrf.mxu0
    %v2092 = vadd.f32 %v1787, %v2091
    %v2093 = vpop.f32.mrf.mxu0
    %2094 = vmatprep.mubr.f32.mxu0 %v1181
    %2095 = vmatmul.mubr.f32.gmra.mxu0 %v1180
    %v2096 = vpop.f32.mrf.mxu0
    %v2097 = vadd.f32 %v1792, %v2096
    %v2098 = vpop.f32.mrf.mxu0
    %2099 = vmatprep.mubr.f32.mxu0 %v1185
    %2100 = vmatmul.mubr.f32.gmra.mxu0 %v1184
    %v2101 = vpop.f32.mrf.mxu0
    %v2102 = vadd.f32 %v1797, %v2101
    %v2103 = vpop.f32.mrf.mxu0
    %2104 = vmatprep.mubr.f32.mxu0 %v1189
    %2105 = vmatmul.mubr.f32.gmra.mxu0 %v1188
    %v2106 = vpop.f32.mrf.mxu0
    %v2107 = vadd.f32 %v1802, %v2106
    %v2108 = vpop.f32.mrf.mxu0
    %2109 = vmatprep.mubr.f32.mxu0 %v1193
    %2110 = vmatmul.mubr.f32.gmra.mxu0 %v1192
    %v2111 = vpop.f32.mrf.mxu0
    %v2112 = vadd.f32 %v1807, %v2111
    %v2113 = vpop.f32.mrf.mxu0
    %2114 = vmatprep.mubr.f32.mxu0 %v1197
    %2115 = vmatmul.mubr.f32.gmra.mxu0 %v1196
    %v2116 = vpop.f32.mrf.mxu0
    %v2117 = vadd.f32 %v1812, %v2116
    %v2118 = vpop.f32.mrf.mxu0
    %2119 = vmatprep.mubr.f32.mxu0 %v1201
    %2120 = vmatmul.mubr.f32.gmra.mxu0 %v1200
    %v2121 = vpop.f32.mrf.mxu0
    %v2122 = vadd.f32 %v1817, %v2121
    %v2123 = vpop.f32.mrf.mxu0
    %2124 = vmatprep.mubr.f32.mxu0 %v1205
    %2125 = vmatmul.mubr.f32.gmra.mxu0 %v1204
    %v2126 = vpop.f32.mrf.mxu0
    %v2127 = vadd.f32 %v1822, %v2126
    %v2128 = vpop.f32.mrf.mxu0
    %2129 = vmatprep.mubr.f32.mxu0 %v1209
    %2130 = vmatmul.mubr.f32.gmra.mxu0 %v1208
    %v2131 = vpop.f32.mrf.mxu0
    %v2132 = vadd.f32 %v1827, %v2131
    %v2133 = vpop.f32.mrf.mxu0
    %2134 = vmatprep.mubr.f32.mxu0 %v1213
    %2135 = vmatmul.mubr.f32.gmra.mxu0 %v1212
    %v2136 = vpop.f32.mrf.mxu0
    %v2137 = vadd.f32 %v1832, %v2136
    %v2138 = vpop.f32.mrf.mxu0
    %2139 = vmatprep.mubr.f32.mxu0 %v1217
    %2140 = vmatmul.mubr.f32.gmra.mxu0 %v1216
    %v2141 = vpop.f32.mrf.mxu0
    %v2142 = vadd.f32 %v1837, %v2141
    %v2143 = vpop.f32.mrf.mxu0
    %2144 = vmatprep.mubr.f32.mxu0 %v1221
    %2145 = vmatmul.mubr.f32.gmra.mxu0 %v1220
    %v2146 = vpop.f32.mrf.mxu0
    %v2147 = vadd.f32 %v1842, %v2146
    %v2148 = vpop.f32.mrf.mxu0
    %2149 = vmatprep.mubr.f32.mxu0 %v1225
    %2150 = vmatmul.mubr.f32.gmra.mxu0 %v1224
    %v2151 = vpop.f32.mrf.mxu0
    %v2152 = vadd.f32 %v1847, %v2151
    %v2153 = vpop.f32.mrf.mxu0
    %2154 = vmatprep.mubr.f32.mxu0 %v1229
    %2155 = vmatmul.mubr.f32.gmra.mxu0 %v1228
    %v2156 = vpop.f32.mrf.mxu0
    %v2157 = vadd.f32 %v1852, %v2156
    %v2158 = vpop.f32.mrf.mxu0
    %2159 = vmatprep.mubr.f32.mxu0 %v1233
    %2160 = vmatmul.mubr.f32.gmra.mxu0 %v1232
    %v2161 = vpop.f32.mrf.mxu0
    %v2162 = vadd.f32 %v1857, %v2161
    %v2163 = vpop.f32.mrf.mxu0
    %2164 = vmatprep.mubr.f32.mxu0 %v1237
    %2165 = vmatmul.mubr.f32.gmra.mxu0 %v1236
    %v2166 = vpop.f32.mrf.mxu0
    %v2167 = vadd.f32 %v1862, %v2166
    %v2168 = vpop.f32.mrf.mxu0
    %2169 = vmatprep.mubr.f32.mxu0 %v1241
    %2170 = vmatmul.mubr.f32.gmra.mxu0 %v1240
    %v2171 = vpop.f32.mrf.mxu0
    %v2172 = vadd.f32 %v1867, %v2171
    %v2173 = vpop.f32.mrf.mxu0
    %2174 = vmatprep.mubr.f32.mxu0 %v1245
    %2175 = vmatmul.mubr.f32.gmra.mxu0 %v1244
    %v2176 = vpop.f32.mrf.mxu0
    %v2177 = vadd.f32 %v1872, %v2176
    %v2178 = vpop.f32.mrf.mxu0
    %2179 = vmatprep.mubr.f32.mxu0 %v1249
    %2180 = vmatmul.mubr.f32.gmra.mxu0 %v1248
    %v2181 = vpop.f32.mrf.mxu0
    %v2182 = vadd.f32 %v1877, %v2181
    %v2183 = vpop.f32.mrf.mxu0
    %2184 = vmatprep.mubr.f32.mxu0 %v1253
    %2185 = vmatmul.mubr.f32.gmra.mxu0 %v1252
    %v2186 = vpop.f32.mrf.mxu0
    %v2187 = vadd.f32 %v1882, %v2186
    %v2188 = vpop.f32.mrf.mxu0
    %2189 = vmatprep.mubr.f32.mxu0 %v1257
    %2190 = vmatmul.mubr.f32.gmra.mxu0 %v1256
    %v2191 = vpop.f32.mrf.mxu0
    %v2192 = vadd.f32 %v1887, %v2191
    %v2193 = vpop.f32.mrf.mxu0
    %2194 = vmatprep.mubr.f32.mxu0 %v1261
    %2195 = vmatmul.mubr.f32.gmra.mxu0 %v1260
    %v2196 = vpop.f32.mrf.mxu0
    %v2197 = vadd.f32 %v1892, %v2196
    %v2198 = vpop.f32.mrf.mxu0
    %2199 = vmatprep.mubr.f32.mxu0 %v1265
    %2200 = vmatmul.mubr.f32.gmra.mxu0 %v1264
    %v2201 = vpop.f32.mrf.mxu0
    %v2202 = vadd.f32 %v1897, %v2201
    %v2203 = vpop.f32.mrf.mxu0
    %2204 = vmatprep.mubr.f32.mxu0 %v1269
    %2205 = vmatmul.mubr.f32.gmra.mxu0 %v1268
    %v2206 = vpop.f32.mrf.mxu0
    %v2207 = vadd.f32 %v1902, %v2206
    %v2208 = vpop.f32.mrf.mxu0
    %2209 = vmatprep.mubr.f32.mxu0 %v1273
    %2210 = vmatmul.mubr.f32.gmra.mxu0 %v1272
    %v2211 = vpop.f32.mrf.mxu0
    %v2212 = vadd.f32 %v1907, %v2211
    %v2213 = vpop.f32.mrf.mxu0
    %2214 = vmatprep.mubr.f32.mxu0 %v1277
    %2215 = vmatmul.mubr.f32.gmra.mxu0 %v1276
    %v2216 = vpop.f32.mrf.mxu0
    %v2217 = vadd.f32 %v1912, %v2216
    %v2218 = vpop.f32.mrf.mxu0
    %2219 = vmatprep.mubr.f32.mxu0 %v1281
    %2220 = vmatmul.mubr.f32.gmra.mxu0 %v1280
    %v2221 = vpop.f32.mrf.mxu0
    %v2222 = vadd.f32 %v1917, %v2221
    %v2223 = vpop.f32.mrf.mxu0
    %2224 = vmatprep.mubr.f32.mxu0 %v1285
    %2225 = vmatmul.mubr.f32.gmra.mxu0 %v1284
    %v2226 = vpop.f32.mrf.mxu0
    %v2227 = vadd.f32 %v1922, %v2226
    %v2228 = vpop.f32.mrf.mxu0
    %2229 = vmatprep.mubr.f32.mxu0 %v1289
    %2230 = vmatmul.mubr.f32.gmra.mxu0 %v1288
    %v2231 = vpop.f32.mrf.mxu0
    %v2232 = vadd.f32 %v1927, %v2231
    %v2233 = vpop.f32.mrf.mxu0
    %2234 = vmatprep.mubr.f32.mxu0 %v1293
    %2235 = vmatmul.mubr.f32.gmra.mxu0 %v1292
    %v2236 = vpop.f32.mrf.mxu0
    %v2237 = vadd.f32 %v1932, %v2236
    %v2238 = vpop.f32.mrf.mxu0
    %2239 = vmatprep.mubr.f32.mxu0 %v1297
    %2240 = vmatmul.mubr.f32.gmra.mxu0 %v1296
    %v2241 = vpop.f32.mrf.mxu0
    %v2242 = vadd.f32 %v1937, %v2241
    %v2243 = vpop.f32.mrf.mxu0
    %2244 = vmatprep.mubr.f32.mxu0 %v1301
    %2245 = vmatmul.mubr.f32.gmra.mxu0 %v1300
    %v2246 = vpop.f32.mrf.mxu0
    %v2247 = vadd.f32 %v1942, %v2246
    %v2248 = vpop.f32.mrf.mxu0
    %2249 = vmatprep.mubr.f32.mxu0 %v1305
    %2250 = vmatmul.mubr.f32.gmra.mxu0 %v1304
    %v2251 = vpop.f32.mrf.mxu0
    %v2252 = vadd.f32 %v1947, %v2251
    %v2253 = vpop.f32.mrf.mxu0
    %2254 = vmatprep.mubr.f32.mxu0 %v1309
    %2255 = vmatmul.mubr.f32.gmra.mxu0 %v1308
    %v2256 = vpop.f32.mrf.mxu0
    %v2257 = vadd.f32 %v1952, %v2256
    %v2258 = vpop.f32.mrf.mxu0
    %2259 = vmatprep.mubr.f32.mxu0 %v1313
    %2260 = vmatmul.mubr.f32.gmra.mxu0 %v1312
    %v2261 = vpop.f32.mrf.mxu0
    %v2262 = vadd.f32 %v1957, %v2261
    %v2263 = vpop.f32.mrf.mxu0
    %2264 = vmatprep.mubr.f32.mxu0 %v1317
    %2265 = vmatmul.mubr.f32.gmra.mxu0 %v1316
    %v2266 = vpop.f32.mrf.mxu0
    %v2267 = vadd.f32 %v1962, %v2266
    %v2268 = vpop.f32.mrf.mxu0
    %2269 = vmatprep.mubr.f32.mxu0 %v1321
    %2270 = vmatmul.mubr.f32.gmra.mxu0 %v1320
    %v2271 = vpop.f32.mrf.mxu0
    %v2272 = vadd.f32 %v1967, %v2271
    %v2273 = vpop.f32.mrf.mxu0
    %2274 = vdwg.mxu0
    %v2275 = vld [vmem:[%s6] sm:$0xff]
    %v2276 = vld [vmem:[%s6 + $0x8] sm:$0xff]
    %v2277 = vld [vmem:[%s6 + $0x10] sm:$0xff]
    %v2278 = vld [vmem:[%s6 + $0x18] sm:$0xff]
    %v2279 = vld [vmem:[%s6 + $0x20] sm:$0xff]
    %v2280 = vld [vmem:[%s6 + $0x28] sm:$0xff]
    %v2281 = vld [vmem:[%s6 + $0x30] sm:$0xff]
    %v2282 = vld [vmem:[%s6 + $0x38] sm:$0xff]
    %v2283 = vld [vmem:[%s6 + $0x40] sm:$0xff]
    %v2284 = vld [vmem:[%s6 + $0x48] sm:$0xff]
    %v2285 = vld [vmem:[%s6 + $0x50] sm:$0xff]
    %v2286 = vld [vmem:[%s6 + $0x58] sm:$0xff]
    %v2287 = vld [vmem:[%s6 + $0x60] sm:$0xff]
    %v2288 = vld [vmem:[%s6 + $0x68] sm:$0xff]
    %v2289 = vld [vmem:[%s6 + $0x70] sm:$0xff]
    %v2290 = vld [vmem:[%s6 + $0x78] sm:$0xff]
    %v2291 = vld [vmem:[%s6 + $0x80] sm:$0xff]
    %v2292 = vld [vmem:[%s6 + $0x88] sm:$0xff]
    %v2293 = vld [vmem:[%s6 + $0x90] sm:$0xff]
    %v2294 = vld [vmem:[%s6 + $0x98] sm:$0xff]
    %v2295 = vld [vmem:[%s6 + $0xa0] sm:$0xff]
    %v2296 = vld [vmem:[%s6 + $0xa8] sm:$0xff]
    %v2297 = vld [vmem:[%s6 + $0xb0] sm:$0xff]
    %v2298 = vld [vmem:[%s6 + $0xb8] sm:$0xff]
    %v2299 = vld [vmem:[%s6 + $0xc0] sm:$0xff]
    %v2300 = vld [vmem:[%s6 + $0xc8] sm:$0xff]
    %v2301 = vld [vmem:[%s6 + $0xd0] sm:$0xff]
    %v2302 = vld [vmem:[%s6 + $0xd8] sm:$0xff]
    %v2303 = vld [vmem:[%s6 + $0xe0] sm:$0xff]
    %v2304 = vld [vmem:[%s6 + $0xe8] sm:$0xff]
    %v2305 = vld [vmem:[%s6 + $0xf0] sm:$0xff]
    %v2306 = vld [vmem:[%s6 + $0xf8] sm:$0xff]
    %v2307 = vld [vmem:[%s6 + $0x100] sm:$0xff]
    %v2308 = vld [vmem:[%s6 + $0x108] sm:$0xff]
    %v2309 = vld [vmem:[%s6 + $0x110] sm:$0xff]
    %v2310 = vld [vmem:[%s6 + $0x118] sm:$0xff]
    %v2311 = vld [vmem:[%s6 + $0x120] sm:$0xff]
    %v2312 = vld [vmem:[%s6 + $0x128] sm:$0xff]
    %v2313 = vld [vmem:[%s6 + $0x130] sm:$0xff]
    %v2314 = vld [vmem:[%s6 + $0x138] sm:$0xff]
    %v2315 = vld [vmem:[%s6 + $0x140] sm:$0xff]
    %v2316 = vld [vmem:[%s6 + $0x148] sm:$0xff]
    %v2317 = vld [vmem:[%s6 + $0x150] sm:$0xff]
    %v2318 = vld [vmem:[%s6 + $0x158] sm:$0xff]
    %v2319 = vld [vmem:[%s6 + $0x160] sm:$0xff]
    %v2320 = vld [vmem:[%s6 + $0x168] sm:$0xff]
    %v2321 = vld [vmem:[%s6 + $0x170] sm:$0xff]
    %v2322 = vld [vmem:[%s6 + $0x178] sm:$0xff]
    %2324 = vset.pattern.permute.xlu0 0
    %2325 = vperm.xlu0 %2324, %v2275
    %v2326 = vpop.permute.xlu0 %2325
    %2329 = vset.pattern.permute.xlu0 0
    %2330 = vperm.xlu0 %2329, %v2276
    %v2331 = vpop.permute.xlu0 %2330
    %2334 = vset.pattern.permute.xlu0 0
    %2335 = vperm.xlu0 %2334, %v2277
    %v2336 = vpop.permute.xlu0 %2335
    %2339 = vset.pattern.permute.xlu0 0
    %2340 = vperm.xlu0 %2339, %v2278
    %v2341 = vpop.permute.xlu0 %2340
    %2344 = vset.pattern.permute.xlu0 0
    %2345 = vperm.xlu0 %2344, %v2279
    %v2346 = vpop.permute.xlu0 %2345
    %2349 = vset.pattern.permute.xlu0 0
    %2350 = vperm.xlu0 %2349, %v2280
    %v2351 = vpop.permute.xlu0 %2350
    %2354 = vset.pattern.permute.xlu0 0
    %2355 = vperm.xlu0 %2354, %v2281
    %v2356 = vpop.permute.xlu0 %2355
    %2359 = vset.pattern.permute.xlu0 0
    %2360 = vperm.xlu0 %2359, %v2282
    %v2361 = vpop.permute.xlu0 %2360
    %2364 = vset.pattern.permute.xlu0 0
    %2365 = vperm.xlu0 %2364, %v2283
    %v2366 = vpop.permute.xlu0 %2365
    %2369 = vset.pattern.permute.xlu0 0
    %2370 = vperm.xlu0 %2369, %v2284
    %v2371 = vpop.permute.xlu0 %2370
    %2374 = vset.pattern.permute.xlu0 0
    %2375 = vperm.xlu0 %2374, %v2285
    %v2376 = vpop.permute.xlu0 %2375
    %2379 = vset.pattern.permute.xlu0 0
    %2380 = vperm.xlu0 %2379, %v2286
    %v2381 = vpop.permute.xlu0 %2380
    %2384 = vset.pattern.permute.xlu0 0
    %2385 = vperm.xlu0 %2384, %v2287
    %v2386 = vpop.permute.xlu0 %2385
    %2389 = vset.pattern.permute.xlu0 0
    %2390 = vperm.xlu0 %2389, %v2288
    %v2391 = vpop.permute.xlu0 %2390
    %2394 = vset.pattern.permute.xlu0 0
    %2395 = vperm.xlu0 %2394, %v2289
    %v2396 = vpop.permute.xlu0 %2395
    %2399 = vset.pattern.permute.xlu0 0
    %2400 = vperm.xlu0 %2399, %v2290
    %v2401 = vpop.permute.xlu0 %2400
    %2404 = vset.pattern.permute.xlu0 0
    %2405 = vperm.xlu0 %2404, %v2291
    %v2406 = vpop.permute.xlu0 %2405
    %2409 = vset.pattern.permute.xlu0 0
    %2410 = vperm.xlu0 %2409, %v2292
    %v2411 = vpop.permute.xlu0 %2410
    %2414 = vset.pattern.permute.xlu0 0
    %2415 = vperm.xlu0 %2414, %v2293
    %v2416 = vpop.permute.xlu0 %2415
    %2419 = vset.pattern.permute.xlu0 0
    %2420 = vperm.xlu0 %2419, %v2294
    %v2421 = vpop.permute.xlu0 %2420
    %2424 = vset.pattern.permute.xlu0 0
    %2425 = vperm.xlu0 %2424, %v2295
    %v2426 = vpop.permute.xlu0 %2425
    %2429 = vset.pattern.permute.xlu0 0
    %2430 = vperm.xlu0 %2429, %v2296
    %v2431 = vpop.permute.xlu0 %2430
    %2434 = vset.pattern.permute.xlu0 0
    %2435 = vperm.xlu0 %2434, %v2297
    %v2436 = vpop.permute.xlu0 %2435
    %2439 = vset.pattern.permute.xlu0 0
    %2440 = vperm.xlu0 %2439, %v2298
    %v2441 = vpop.permute.xlu0 %2440
    %2444 = vset.pattern.permute.xlu0 0
    %2445 = vperm.xlu0 %2444, %v2299
    %v2446 = vpop.permute.xlu0 %2445
    %2449 = vset.pattern.permute.xlu0 0
    %2450 = vperm.xlu0 %2449, %v2300
    %v2451 = vpop.permute.xlu0 %2450
    %2454 = vset.pattern.permute.xlu0 0
    %2455 = vperm.xlu0 %2454, %v2301
    %v2456 = vpop.permute.xlu0 %2455
    %2459 = vset.pattern.permute.xlu0 0
    %2460 = vperm.xlu0 %2459, %v2302
    %v2461 = vpop.permute.xlu0 %2460
    %2464 = vset.pattern.permute.xlu0 0
    %2465 = vperm.xlu0 %2464, %v2303
    %v2466 = vpop.permute.xlu0 %2465
    %2469 = vset.pattern.permute.xlu0 0
    %2470 = vperm.xlu0 %2469, %v2304
    %v2471 = vpop.permute.xlu0 %2470
    %2474 = vset.pattern.permute.xlu0 0
    %2475 = vperm.xlu0 %2474, %v2305
    %v2476 = vpop.permute.xlu0 %2475
    %2479 = vset.pattern.permute.xlu0 0
    %2480 = vperm.xlu0 %2479, %v2306
    %v2481 = vpop.permute.xlu0 %2480
    %2484 = vset.pattern.permute.xlu0 0
    %2485 = vperm.xlu0 %2484, %v2307
    %v2486 = vpop.permute.xlu0 %2485
    %2489 = vset.pattern.permute.xlu0 0
    %2490 = vperm.xlu0 %2489, %v2308
    %v2491 = vpop.permute.xlu0 %2490
    %2494 = vset.pattern.permute.xlu0 0
    %2495 = vperm.xlu0 %2494, %v2309
    %v2496 = vpop.permute.xlu0 %2495
    %2499 = vset.pattern.permute.xlu0 0
    %2500 = vperm.xlu0 %2499, %v2310
    %v2501 = vpop.permute.xlu0 %2500
    %2504 = vset.pattern.permute.xlu0 0
    %2505 = vperm.xlu0 %2504, %v2311
    %v2506 = vpop.permute.xlu0 %2505
    %2509 = vset.pattern.permute.xlu0 0
    %2510 = vperm.xlu0 %2509, %v2312
    %v2511 = vpop.permute.xlu0 %2510
    %2514 = vset.pattern.permute.xlu0 0
    %2515 = vperm.xlu0 %2514, %v2313
    %v2516 = vpop.permute.xlu0 %2515
    %2519 = vset.pattern.permute.xlu0 0
    %2520 = vperm.xlu0 %2519, %v2314
    %v2521 = vpop.permute.xlu0 %2520
    %2524 = vset.pattern.permute.xlu0 0
    %2525 = vperm.xlu0 %2524, %v2315
    %v2526 = vpop.permute.xlu0 %2525
    %2529 = vset.pattern.permute.xlu0 0
    %2530 = vperm.xlu0 %2529, %v2316
    %v2531 = vpop.permute.xlu0 %2530
    %2534 = vset.pattern.permute.xlu0 0
    %2535 = vperm.xlu0 %2534, %v2317
    %v2536 = vpop.permute.xlu0 %2535
    %2539 = vset.pattern.permute.xlu0 0
    %2540 = vperm.xlu0 %2539, %v2318
    %v2541 = vpop.permute.xlu0 %2540
    %2544 = vset.pattern.permute.xlu0 0
    %2545 = vperm.xlu0 %2544, %v2319
    %v2546 = vpop.permute.xlu0 %2545
    %2549 = vset.pattern.permute.xlu0 0
    %2550 = vperm.xlu0 %2549, %v2320
    %v2551 = vpop.permute.xlu0 %2550
    %2554 = vset.pattern.permute.xlu0 0
    %2555 = vperm.xlu0 %2554, %v2321
    %v2556 = vpop.permute.xlu0 %2555
    %2559 = vset.pattern.permute.xlu0 0
    %2560 = vperm.xlu0 %2559, %v2322
    %v2561 = vpop.permute.xlu0 %2560
    %v2563 = vadd.f32 %v2037, %v2326
    %v2564 = vadd.f32 %v2042, %v2331
    %v2565 = vadd.f32 %v2047, %v2336
    %v2566 = vadd.f32 %v2052, %v2341
    %v2567 = vadd.f32 %v2057, %v2346
    %v2568 = vadd.f32 %v2062, %v2351
    %v2569 = vadd.f32 %v2067, %v2356
    %v2570 = vadd.f32 %v2072, %v2361
    %v2571 = vadd.f32 %v2077, %v2366
    %v2572 = vadd.f32 %v2082, %v2371
    %v2573 = vadd.f32 %v2087, %v2376
    %v2574 = vadd.f32 %v2092, %v2381
    %v2575 = vadd.f32 %v2097, %v2386
    %v2576 = vadd.f32 %v2102, %v2391
    %v2577 = vadd.f32 %v2107, %v2396
    %v2578 = vadd.f32 %v2112, %v2401
    %v2579 = vadd.f32 %v2117, %v2406
    %v2580 = vadd.f32 %v2122, %v2411
    %v2581 = vadd.f32 %v2127, %v2416
    %v2582 = vadd.f32 %v2132, %v2421
    %v2583 = vadd.f32 %v2137, %v2426
    %v2584 = vadd.f32 %v2142, %v2431
    %v2585 = vadd.f32 %v2147, %v2436
    %v2586 = vadd.f32 %v2152, %v2441
    %v2587 = vadd.f32 %v2157, %v2446
    %v2588 = vadd.f32 %v2162, %v2451
    %v2589 = vadd.f32 %v2167, %v2456
    %v2590 = vadd.f32 %v2172, %v2461
    %v2591 = vadd.f32 %v2177, %v2466
    %v2592 = vadd.f32 %v2182, %v2471
    %v2593 = vadd.f32 %v2187, %v2476
    %v2594 = vadd.f32 %v2192, %v2481
    %v2595 = vadd.f32 %v2197, %v2486
    %v2596 = vadd.f32 %v2202, %v2491
    %v2597 = vadd.f32 %v2207, %v2496
    %v2598 = vadd.f32 %v2212, %v2501
    %v2599 = vadd.f32 %v2217, %v2506
    %v2600 = vadd.f32 %v2222, %v2511
    %v2601 = vadd.f32 %v2227, %v2516
    %v2602 = vadd.f32 %v2232, %v2521
    %v2603 = vadd.f32 %v2237, %v2526
    %v2604 = vadd.f32 %v2242, %v2531
    %v2605 = vadd.f32 %v2247, %v2536
    %v2606 = vadd.f32 %v2252, %v2541
    %v2607 = vadd.f32 %v2257, %v2546
    %v2608 = vadd.f32 %v2262, %v2551
    %v2609 = vadd.f32 %v2267, %v2556
    %v2610 = vadd.f32 %v2272, %v2561
    %v2611 = vmax.f32 %v2563, 0.0
    %v2612 = vmax.f32 %v2564, 0.0
    %v2613 = vmax.f32 %v2565, 0.0
    %v2614 = vmax.f32 %v2566, 0.0
    %v2615 = vmax.f32 %v2567, 0.0
    %v2616 = vmax.f32 %v2568, 0.0
    %v2617 = vmax.f32 %v2569, 0.0
    %v2618 = vmax.f32 %v2570, 0.0
    %v2619 = vmax.f32 %v2571, 0.0
    %v2620 = vmax.f32 %v2572, 0.0
    %v2621 = vmax.f32 %v2573, 0.0
    %v2622 = vmax.f32 %v2574, 0.0
    %v2623 = vmax.f32 %v2575, 0.0
    %v2624 = vmax.f32 %v2576, 0.0
    %v2625 = vmax.f32 %v2577, 0.0
    %v2626 = vmax.f32 %v2578, 0.0
    %v2627 = vmax.f32 %v2579, 0.0
    %v2628 = vmax.f32 %v2580, 0.0
    %v2629 = vmax.f32 %v2581, 0.0
    %v2630 = vmax.f32 %v2582, 0.0
    %v2631 = vmax.f32 %v2583, 0.0
    %v2632 = vmax.f32 %v2584, 0.0
    %v2633 = vmax.f32 %v2585, 0.0
    %v2634 = vmax.f32 %v2586, 0.0
    %v2635 = vmax.f32 %v2587, 0.0
    %v2636 = vmax.f32 %v2588, 0.0
    %v2637 = vmax.f32 %v2589, 0.0
    %v2638 = vmax.f32 %v2590, 0.0
    %v2639 = vmax.f32 %v2591, 0.0
    %v2640 = vmax.f32 %v2592, 0.0
    %v2641 = vmax.f32 %v2593, 0.0
    %v2642 = vmax.f32 %v2594, 0.0
    %v2643 = vmax.f32 %v2595, 0.0
    %v2644 = vmax.f32 %v2596, 0.0
    %v2645 = vmax.f32 %v2597, 0.0
    %v2646 = vmax.f32 %v2598, 0.0
    %v2647 = vmax.f32 %v2599, 0.0
    %v2648 = vmax.f32 %v2600, 0.0
    %v2649 = vmax.f32 %v2601, 0.0
    %v2650 = vmax.f32 %v2602, 0.0
    %v2651 = vmax.f32 %v2603, 0.0
    %v2652 = vmax.f32 %v2604, 0.0
    %v2653 = vmax.f32 %v2605, 0.0
    %v2654 = vmax.f32 %v2606, 0.0
    %v2655 = vmax.f32 %v2607, 0.0
    %v2656 = vmax.f32 %v2608, 0.0
    %v2657 = vmax.f32 %v2609, 0.0
    %v2658 = vmax.f32 %v2610, 0.0
    %v2659 = vld [vmem:[%s7] sm:$0xff]
    %v2660 = vld [vmem:[%s7 + $0x8] sm:$0xff]
    %v2661 = vld [vmem:[%s7 + $0x10] sm:$0xff]
    %v2662 = vld [vmem:[%s7 + $0x18] sm:$0xff]
    %v2663 = vld [vmem:[%s7 + $0x20] sm:$0xff]
    %v2664 = vld [vmem:[%s7 + $0x28] sm:$0xff]
    %v2665 = vld [vmem:[%s7 + $0x30] sm:$0xff]
    %v2666 = vld [vmem:[%s7 + $0x38] sm:$0xff]
    %v2667 = vld [vmem:[%s7 + $0x40] sm:$0xff]
    %v2668 = vld [vmem:[%s7 + $0x48] sm:$0xff]
    %v2669 = vld [vmem:[%s7 + $0x50] sm:$0xff]
    %v2670 = vld [vmem:[%s7 + $0x58] sm:$0xff]
    %v2671 = vld [vmem:[%s7 + $0x60] sm:$0xff]
    %v2672 = vld [vmem:[%s7 + $0x68] sm:$0xff]
    %v2673 = vld [vmem:[%s7 + $0x70] sm:$0xff]
    %v2674 = vld [vmem:[%s7 + $0x78] sm:$0xff]
    %v2675 = vld [vmem:[%s7 + $0x80] sm:$0xff]
    %v2676 = vld [vmem:[%s7 + $0x88] sm:$0xff]
    %v2677 = vld [vmem:[%s7 + $0x90] sm:$0xff]
    %v2678 = vld [vmem:[%s7 + $0x98] sm:$0xff]
    %v2679 = vld [vmem:[%s7 + $0xa0] sm:$0xff]
    %v2680 = vld [vmem:[%s7 + $0xa8] sm:$0xff]
    %v2681 = vld [vmem:[%s7 + $0xb0] sm:$0xff]
    %v2682 = vld [vmem:[%s7 + $0xb8] sm:$0xff]
    %v2683 = vld [vmem:[%s7 + $0xc0] sm:$0xff]
    %v2684 = vld [vmem:[%s7 + $0xc8] sm:$0xff]
    %v2685 = vld [vmem:[%s7 + $0xd0] sm:$0xff]
    %v2686 = vld [vmem:[%s7 + $0xd8] sm:$0xff]
    %v2687 = vld [vmem:[%s7 + $0xe0] sm:$0xff]
    %v2688 = vld [vmem:[%s7 + $0xe8] sm:$0xff]
    %v2689 = vld [vmem:[%s7 + $0xf0] sm:$0xff]
    %v2690 = vld [vmem:[%s7 + $0xf8] sm:$0xff]
    %v2691 = vld [vmem:[%s7 + $0x100] sm:$0xff]
    %v2692 = vld [vmem:[%s7 + $0x108] sm:$0xff]
    %v2693 = vld [vmem:[%s7 + $0x110] sm:$0xff]
    %v2694 = vld [vmem:[%s7 + $0x118] sm:$0xff]
    %v2695 = vld [vmem:[%s7 + $0x120] sm:$0xff]
    %v2696 = vld [vmem:[%s7 + $0x128] sm:$0xff]
    %v2697 = vld [vmem:[%s7 + $0x130] sm:$0xff]
    %v2698 = vld [vmem:[%s7 + $0x138] sm:$0xff]
    %v2699 = vld [vmem:[%s7 + $0x140] sm:$0xff]
    %v2700 = vld [vmem:[%s7 + $0x148] sm:$0xff]
    %v2701 = vld [vmem:[%s7 + $0x150] sm:$0xff]
    %v2702 = vld [vmem:[%s7 + $0x158] sm:$0xff]
    %v2703 = vld [vmem:[%s7 + $0x160] sm:$0xff]
    %v2704 = vld [vmem:[%s7 + $0x168] sm:$0xff]
    %v2705 = vld [vmem:[%s7 + $0x170] sm:$0xff]
    %v2706 = vld [vmem:[%s7 + $0x178] sm:$0xff]
    %2708 = vset.pattern.permute.xlu0 0
    %2709 = vperm.xlu0 %2708, %v2659
    %v2710 = vpop.permute.xlu0 %2709
    %2713 = vset.pattern.permute.xlu0 0
    %2714 = vperm.xlu0 %2713, %v2660
    %v2715 = vpop.permute.xlu0 %2714
    %2718 = vset.pattern.permute.xlu0 0
    %2719 = vperm.xlu0 %2718, %v2661
    %v2720 = vpop.permute.xlu0 %2719
    %2723 = vset.pattern.permute.xlu0 0
    %2724 = vperm.xlu0 %2723, %v2662
    %v2725 = vpop.permute.xlu0 %2724
    %2728 = vset.pattern.permute.xlu0 0
    %2729 = vperm.xlu0 %2728, %v2663
    %v2730 = vpop.permute.xlu0 %2729
    %2733 = vset.pattern.permute.xlu0 0
    %2734 = vperm.xlu0 %2733, %v2664
    %v2735 = vpop.permute.xlu0 %2734
    %2738 = vset.pattern.permute.xlu0 0
    %2739 = vperm.xlu0 %2738, %v2665
    %v2740 = vpop.permute.xlu0 %2739
    %2743 = vset.pattern.permute.xlu0 0
    %2744 = vperm.xlu0 %2743, %v2666
    %v2745 = vpop.permute.xlu0 %2744
    %2748 = vset.pattern.permute.xlu0 0
    %2749 = vperm.xlu0 %2748, %v2667
    %v2750 = vpop.permute.xlu0 %2749
    %2753 = vset.pattern.permute.xlu0 0
    %2754 = vperm.xlu0 %2753, %v2668
    %v2755 = vpop.permute.xlu0 %2754
    %2758 = vset.pattern.permute.xlu0 0
    %2759 = vperm.xlu0 %2758, %v2669
    %v2760 = vpop.permute.xlu0 %2759
    %2763 = vset.pattern.permute.xlu0 0
    %2764 = vperm.xlu0 %2763, %v2670
    %v2765 = vpop.permute.xlu0 %2764
    %2768 = vset.pattern.permute.xlu0 0
    %2769 = vperm.xlu0 %2768, %v2671
    %v2770 = vpop.permute.xlu0 %2769
    %2773 = vset.pattern.permute.xlu0 0
    %2774 = vperm.xlu0 %2773, %v2672
    %v2775 = vpop.permute.xlu0 %2774
    %2778 = vset.pattern.permute.xlu0 0
    %2779 = vperm.xlu0 %2778, %v2673
    %v2780 = vpop.permute.xlu0 %2779
    %2783 = vset.pattern.permute.xlu0 0
    %2784 = vperm.xlu0 %2783, %v2674
    %v2785 = vpop.permute.xlu0 %2784
    %2788 = vset.pattern.permute.xlu0 0
    %2789 = vperm.xlu0 %2788, %v2675
    %v2790 = vpop.permute.xlu0 %2789
    %2793 = vset.pattern.permute.xlu0 0
    %2794 = vperm.xlu0 %2793, %v2676
    %v2795 = vpop.permute.xlu0 %2794
    %2798 = vset.pattern.permute.xlu0 0
    %2799 = vperm.xlu0 %2798, %v2677
    %v2800 = vpop.permute.xlu0 %2799
    %2803 = vset.pattern.permute.xlu0 0
    %2804 = vperm.xlu0 %2803, %v2678
    %v2805 = vpop.permute.xlu0 %2804
    %2808 = vset.pattern.permute.xlu0 0
    %2809 = vperm.xlu0 %2808, %v2679
    %v2810 = vpop.permute.xlu0 %2809
    %2813 = vset.pattern.permute.xlu0 0
    %2814 = vperm.xlu0 %2813, %v2680
    %v2815 = vpop.permute.xlu0 %2814
    %2818 = vset.pattern.permute.xlu0 0
    %2819 = vperm.xlu0 %2818, %v2681
    %v2820 = vpop.permute.xlu0 %2819
    %2823 = vset.pattern.permute.xlu0 0
    %2824 = vperm.xlu0 %2823, %v2682
    %v2825 = vpop.permute.xlu0 %2824
    %2828 = vset.pattern.permute.xlu0 0
    %2829 = vperm.xlu0 %2828, %v2683
    %v2830 = vpop.permute.xlu0 %2829
    %2833 = vset.pattern.permute.xlu0 0
    %2834 = vperm.xlu0 %2833, %v2684
    %v2835 = vpop.permute.xlu0 %2834
    %2838 = vset.pattern.permute.xlu0 0
    %2839 = vperm.xlu0 %2838, %v2685
    %v2840 = vpop.permute.xlu0 %2839
    %2843 = vset.pattern.permute.xlu0 0
    %2844 = vperm.xlu0 %2843, %v2686
    %v2845 = vpop.permute.xlu0 %2844
    %2848 = vset.pattern.permute.xlu0 0
    %2849 = vperm.xlu0 %2848, %v2687
    %v2850 = vpop.permute.xlu0 %2849
    %2853 = vset.pattern.permute.xlu0 0
    %2854 = vperm.xlu0 %2853, %v2688
    %v2855 = vpop.permute.xlu0 %2854
    %2858 = vset.pattern.permute.xlu0 0
    %2859 = vperm.xlu0 %2858, %v2689
    %v2860 = vpop.permute.xlu0 %2859
    %2863 = vset.pattern.permute.xlu0 0
    %2864 = vperm.xlu0 %2863, %v2690
    %v2865 = vpop.permute.xlu0 %2864
    %2868 = vset.pattern.permute.xlu0 0
    %2869 = vperm.xlu0 %2868, %v2691
    %v2870 = vpop.permute.xlu0 %2869
    %2873 = vset.pattern.permute.xlu0 0
    %2874 = vperm.xlu0 %2873, %v2692
    %v2875 = vpop.permute.xlu0 %2874
    %2878 = vset.pattern.permute.xlu0 0
    %2879 = vperm.xlu0 %2878, %v2693
    %v2880 = vpop.permute.xlu0 %2879
    %2883 = vset.pattern.permute.xlu0 0
    %2884 = vperm.xlu0 %2883, %v2694
    %v2885 = vpop.permute.xlu0 %2884
    %2888 = vset.pattern.permute.xlu0 0
    %2889 = vperm.xlu0 %2888, %v2695
    %v2890 = vpop.permute.xlu0 %2889
    %2893 = vset.pattern.permute.xlu0 0
    %2894 = vperm.xlu0 %2893, %v2696
    %v2895 = vpop.permute.xlu0 %2894
    %2898 = vset.pattern.permute.xlu0 0
    %2899 = vperm.xlu0 %2898, %v2697
    %v2900 = vpop.permute.xlu0 %2899
    %2903 = vset.pattern.permute.xlu0 0
    %2904 = vperm.xlu0 %2903, %v2698
    %v2905 = vpop.permute.xlu0 %2904
    %2908 = vset.pattern.permute.xlu0 0
    %2909 = vperm.xlu0 %2908, %v2699
    %v2910 = vpop.permute.xlu0 %2909
    %2913 = vset.pattern.permute.xlu0 0
    %2914 = vperm.xlu0 %2913, %v2700
    %v2915 = vpop.permute.xlu0 %2914
    %2918 = vset.pattern.permute.xlu0 0
    %2919 = vperm.xlu0 %2918, %v2701
    %v2920 = vpop.permute.xlu0 %2919
    %2923 = vset.pattern.permute.xlu0 0
    %2924 = vperm.xlu0 %2923, %v2702
    %v2925 = vpop.permute.xlu0 %2924
    %2928 = vset.pattern.permute.xlu0 0
    %2929 = vperm.xlu0 %2928, %v2703
    %v2930 = vpop.permute.xlu0 %2929
    %2933 = vset.pattern.permute.xlu0 0
    %2934 = vperm.xlu0 %2933, %v2704
    %v2935 = vpop.permute.xlu0 %2934
    %2938 = vset.pattern.permute.xlu0 0
    %2939 = vperm.xlu0 %2938, %v2705
    %v2940 = vpop.permute.xlu0 %2939
    %2943 = vset.pattern.permute.xlu0 0
    %2944 = vperm.xlu0 %2943, %v2706
    %v2945 = vpop.permute.xlu0 %2944
    %v2947 = vmul.f32 %v2611, %v2710
    %v2948 = vmul.f32 %v2612, %v2715
    %v2949 = vmul.f32 %v2613, %v2720
    %v2950 = vmul.f32 %v2614, %v2725
    %v2951 = vmul.f32 %v2615, %v2730
    %v2952 = vmul.f32 %v2616, %v2735
    %v2953 = vmul.f32 %v2617, %v2740
    %v2954 = vmul.f32 %v2618, %v2745
    %v2955 = vmul.f32 %v2619, %v2750
    %v2956 = vmul.f32 %v2620, %v2755
    %v2957 = vmul.f32 %v2621, %v2760
    %v2958 = vmul.f32 %v2622, %v2765
    %v2959 = vmul.f32 %v2623, %v2770
    %v2960 = vmul.f32 %v2624, %v2775
    %v2961 = vmul.f32 %v2625, %v2780
    %v2962 = vmul.f32 %v2626, %v2785
    %v2963 = vmul.f32 %v2627, %v2790
    %v2964 = vmul.f32 %v2628, %v2795
    %v2965 = vmul.f32 %v2629, %v2800
    %v2966 = vmul.f32 %v2630, %v2805
    %v2967 = vmul.f32 %v2631, %v2810
    %v2968 = vmul.f32 %v2632, %v2815
    %v2969 = vmul.f32 %v2633, %v2820
    %v2970 = vmul.f32 %v2634, %v2825
    %v2971 = vmul.f32 %v2635, %v2830
    %v2972 = vmul.f32 %v2636, %v2835
    %v2973 = vmul.f32 %v2637, %v2840
    %v2974 = vmul.f32 %v2638, %v2845
    %v2975 = vmul.f32 %v2639, %v2850
    %v2976 = vmul.f32 %v2640, %v2855
    %v2977 = vmul.f32 %v2641, %v2860
    %v2978 = vmul.f32 %v2642, %v2865
    %v2979 = vmul.f32 %v2643, %v2870
    %v2980 = vmul.f32 %v2644, %v2875
    %v2981 = vmul.f32 %v2645, %v2880
    %v2982 = vmul.f32 %v2646, %v2885
    %v2983 = vmul.f32 %v2647, %v2890
    %v2984 = vmul.f32 %v2648, %v2895
    %v2985 = vmul.f32 %v2649, %v2900
    %v2986 = vmul.f32 %v2650, %v2905
    %v2987 = vmul.f32 %v2651, %v2910
    %v2988 = vmul.f32 %v2652, %v2915
    %v2989 = vmul.f32 %v2653, %v2920
    %v2990 = vmul.f32 %v2654, %v2925
    %v2991 = vmul.f32 %v2655, %v2930
    %v2992 = vmul.f32 %v2656, %v2935
    %v2993 = vmul.f32 %v2657, %v2940
    %v2994 = vmul.f32 %v2658, %v2945
    %v2995 = vadd.f32 %v2947, %v2948
    %v2996 = vadd.f32 %v2995, %v2949
    %v2997 = vadd.f32 %v2996, %v2950
    %v2998 = vadd.f32 %v2997, %v2951
    %v2999 = vadd.f32 %v2998, %v2952
    %v3000 = vadd.f32 %v2999, %v2953
    %v3001 = vadd.f32 %v3000, %v2954
    %v3002 = vadd.f32 %v3001, %v2955
    %v3003 = vadd.f32 %v3002, %v2956
    %v3004 = vadd.f32 %v3003, %v2957
    %v3005 = vadd.f32 %v3004, %v2958
    %v3006 = vadd.f32 %v3005, %v2959
    %v3007 = vadd.f32 %v3006, %v2960
    %v3008 = vadd.f32 %v3007, %v2961
    %v3009 = vadd.f32 %v3008, %v2962
    %v3010 = vadd.f32 %v3009, %v2963
    %v3011 = vadd.f32 %v3010, %v2964
    %v3012 = vadd.f32 %v3011, %v2965
    %v3013 = vadd.f32 %v3012, %v2966
    %v3014 = vadd.f32 %v3013, %v2967
    %v3015 = vadd.f32 %v3014, %v2968
    %v3016 = vadd.f32 %v3015, %v2969
    %v3017 = vadd.f32 %v3016, %v2970
    %v3018 = vadd.f32 %v3017, %v2971
    %v3019 = vadd.f32 %v3018, %v2972
    %v3020 = vadd.f32 %v3019, %v2973
    %v3021 = vadd.f32 %v3020, %v2974
    %v3022 = vadd.f32 %v3021, %v2975
    %v3023 = vadd.f32 %v3022, %v2976
    %v3024 = vadd.f32 %v3023, %v2977
    %v3025 = vadd.f32 %v3024, %v2978
    %v3026 = vadd.f32 %v3025, %v2979
    %v3027 = vadd.f32 %v3026, %v2980
    %v3028 = vadd.f32 %v3027, %v2981
    %v3029 = vadd.f32 %v3028, %v2982
    %v3030 = vadd.f32 %v3029, %v2983
    %v3031 = vadd.f32 %v3030, %v2984
    %v3032 = vadd.f32 %v3031, %v2985
    %v3033 = vadd.f32 %v3032, %v2986
    %v3034 = vadd.f32 %v3033, %v2987
    %v3035 = vadd.f32 %v3034, %v2988
    %v3036 = vadd.f32 %v3035, %v2989
    %v3037 = vadd.f32 %v3036, %v2990
    %v3038 = vadd.f32 %v3037, %v2991
    %v3039 = vadd.f32 %v3038, %v2992
    %v3040 = vadd.f32 %v3039, %v2993
    %v3041 = vadd.f32 %v3040, %v2994
    %v3042 = vrot.slane %v3041, 4
    %v3043 = vadd.f32 %v3041, %v3042
    %v3044 = vrot.slane %v3043, 2
    %v3045 = vadd.f32 %v3043, %v3044
    %v3046 = vrot.slane %v3045, 1
    %v3047 = vadd.f32 %v3045, %v3046
    %v3048 = vld [vmem:[#allocation2] sm:$0x1]
    %3050 = vset.pattern.permute.xlu0 0
    %3051 = vperm.xlu0 %3050, %v3048
    %v3052 = vpop.permute.xlu0 %3051
    %v3054 = vlaneseq
    %v3055 = vshrl.u32 %v3054, 7
    %v3056 = vsub.s32 0, %v3055
    %v3057 = vrot.slane %v3052, %v3056
    %v3058 = vadd.f32 %v3047, %v3057
    %3059 = vst [vmem:[#allocation3] sm:$0x1] %v3058
    // Predicated region
    $region38: #{tpu_custom_call.1} parent=1 // pred_check
      _
    $region39: #{tpu_custom_call.1} parent=1 // pred_check_branch
      %3061 = sbr.rel (0) target = $region41
    $region40: #{tpu_custom_call.1} parent=1 // pred_region
      %s3063 = ssub.s32 16, 16
      %3064 = vsyncadd [#allocation4], %s3063
      %s3066 = sshll.u32 [#allocation3], 4
      %s3067 = int_to_ptr.vmem [resolvable:$true] %s3066
      %3069 = dma.vmem_to_hbm [thread:$0]  %s3067, 16, %s9, [#allocation4]
    $region41: #{tpu_custom_call.1} parent=1 // pred_fallthru
      _
    // Predicated region
    $region42: #{tpu_custom_call.1} parent=1 // pred_check
      _
    $region43: #{tpu_custom_call.1} parent=1 // pred_check_branch
      %3071 = sbr.rel (0) target = $region45
    $region44: #{tpu_custom_call.1} parent=1 // pred_region
      %3072 = dma.done [#allocation4], 16
    $region45: #{tpu_custom_call.1} parent=1 // pred_fallthru
      _
    %3073 = vsyncpa [#allocation4], 1

</llo_original>
